<compile_context>
chip_gen: v5e
topology: v5e:2x2
jax: 0.10.0
libtpu: 0.0.40
codegen_flags: <defaults>
</compile_context>

<pallas_src>
import jax
import jax.numpy as jnp
from jax.experimental import pallas as pl
from jax.experimental.pallas import tpu as pltpu

# ----------------------------------------------------------------------------
# Model hyper-parameters (small, deterministic, lane-aligned)
# ----------------------------------------------------------------------------
IN_CHANS = 4
H = W = 16
CONV_CH = 128          # conv output channels (lane width 128)
NUM_FEATURES = 128     # backbone num_features (lane-aligned)
KDE_DIM = 128          # fixed by nn.Linear(128, 256) in the module
KDE_HID = 256
HEAD_HID = 64
OUT_DIM = 4
HID_ALL = OUT_DIM * HEAD_HID   # 256 (heads packed column-wise)
OUT_PAD = 128          # logits padded to lane width; sliced back in wrapper


# ----------------------------------------------------------------------------
# Fully fused kernel: backbone + kde_transform + all MLP heads, one image per
# grid step.  Everything intermediate stays in VMEM / vregs.
#
#   patches : [B, HW, K]  bf16  (K = 9*Cin)        block (1, HW, K)
#   kde3    : [B, 1, 128] f32                      block (1, 1, 128)
#   conv_w  : [K, C1] bf16        conv_b : [1, C1] f32
#   fc_w    : [C1, F] bf16        fc_b   : [1, F]  f32
#   kde_w   : [128, 256] bf16     kde_b  : [1, 256] f32
#   w1_base : [F, 256] bf16       w1_kde : [256, 256] bf16   b1: [1, 256] f32
#   w2      : [256, OUT_PAD] bf16 (block-diagonal) b2: [1, OUT_PAD] f32
#   out     : [B, 1, OUT_PAD] f32 (first OUT_DIM lanes are real outputs)
# ----------------------------------------------------------------------------
def fused_mlp_layer_kernel(p_ref, kde_ref, cw_ref, cb_ref, fw_ref, fb_ref,
                           kw_ref, kb_ref, w1b_ref, w1k_ref, b1_ref,
                           w2_ref, b2_ref, o_ref):
    hw = p_ref.shape[1]
    inv_hw = 1.0 / float(hw)

    # --- backbone stand-in: conv3x3 as matmul + bias + ReLU + GAP + FC ------
    feat = jnp.dot(p_ref[0], cw_ref[...],
                   preferred_element_type=jnp.float32)            # [HW, C1]
    feat = jnp.maximum(feat + cb_ref[...], 0.0)

    pooled = jnp.sum(feat, axis=0, keepdims=True) * inv_hw        # [1, C1]

    base = jnp.dot(pooled.astype(jnp.bfloat16), fw_ref[...],
                   preferred_element_type=jnp.float32) + fb_ref[...]   # [1, F]

    # --- kde_transform: Linear(128,256) + ReLU -------------------------------
    kde = jnp.dot(kde_ref[0].astype(jnp.bfloat16), kw_ref[...],
                  preferred_element_type=jnp.float32) + kb_ref[...]
    kde = jnp.maximum(kde, 0.0)                                    # [1, 256]

    # --- heads layer 1: concat replaced by two matmuls summed in f32 --------
    hid = (jnp.dot(base.astype(jnp.bfloat16), w1b_ref[...],
                   preferred_element_type=jnp.float32)
           + jnp.dot(kde.astype(jnp.bfloat16), w1k_ref[...],
                     preferred_element_type=jnp.float32)
           + b1_ref[...])
    hid = jnp.maximum(hid, 0.0)                                    # [1, HID_ALL]

    # --- heads layer 2: block-diagonal, lane-padded ---------------------------
    out = jnp.dot(hid.astype(jnp.bfloat16), w2_ref[...],
                  preferred_element_type=jnp.float32) + b2_ref[...]
    o_ref[0] = out.astype(o_ref.dtype)                             # [1, OUT_PAD]


def mlp_layer_forward(x_nchw, kde_raw, params):
    b, cin, h, w = x_nchw.shape
    hw = h * w
    k = 9 * cin
    c1 = params["conv_w"].shape[1]
    f = params["fc_w"].shape[1]
    kdim, khid = params["kde_w"].shape
    hid_all = params["w1_base"].shape[1]
    out_pad = params["w2"].shape[1]

    # im2col in the wrapper, kept in bf16 (halves the 9x patch HBM traffic).
    x_nhwc = jnp.transpose(x_nchw, (0, 2, 3, 1))
    xp = jnp.pad(x_nhwc, ((0, 0), (1, 1), (1, 1), (0, 0)))
    taps = [xp[:, dh:dh + h, dw:dw + w, :]
            for dh in range(3) for dw in range(3)]
    patches = jnp.concatenate(taps, axis=-1).reshape(b, hw, k)
    patches = patches.astype(jnp.bfloat16)

    # Whole per-image feature map must fit in VMEM (no M-reduction axis).
    # TODO(synk): for a real backbone with large HW, re-introduce an inner
    # "arbitrary" M-reduction axis + GAP accumulator and size the tile against
    # v7x's 64 MiB physical VMEM.
    assert hw * (k * 2 + c1 * 4) <= 8 * 1024 * 1024, "per-image tile too big"

    kde3 = kde_raw.astype(jnp.float32).reshape(b, 1, kdim)

    weight_bytes = 2 * (k * c1 + c1 * f + kdim * khid
                        + f * hid_all + khid * hid_all + hid_all * out_pad)
    flops = 2 * b * (hw * k * c1 + c1 * f + kdim * khid
                     + f * hid_all + khid * hid_all + hid_all * out_pad)
    bytes_accessed = (patches.size * 2 + kde3.size * 4 + weight_bytes
                      + b * out_pad * 4)
    cost = pl.CostEstimate(flops=flops, transcendentals=0,
                           bytes_accessed=bytes_accessed)

    # Explicit VMEM budget: double-buffered per-image I/O + (conservatively
    # double-buffered) resident weights + f32 feature intermediate + slack.
    vmem_bytes = (2 * (hw * k * 2 + kdim * 4 + out_pad * 4)
                  + 2 * weight_bytes + hw * c1 * 4)
    vmem_limit = max(2 * vmem_bytes, 2 * 1024 * 1024)

    out = pl.pallas_call(
        fused_mlp_layer_kernel,
        out_shape=jax.ShapeDtypeStruct((b, 1, out_pad), jnp.float32),
        grid_spec=pltpu.PrefetchScalarGridSpec(
            num_scalar_prefetch=0,
            grid=(b,),                                 # batch only, megacore-parallel
            in_specs=[
                pl.BlockSpec((1, hw, k), lambda i: (i, 0, 0)),
                pl.BlockSpec((1, 1, kdim), lambda i: (i, 0, 0)),
                pl.BlockSpec((k, c1), lambda i: (0, 0)),
                pl.BlockSpec((1, c1), lambda i: (0, 0)),
                pl.BlockSpec((c1, f), lambda i: (0, 0)),
                pl.BlockSpec((1, f), lambda i: (0, 0)),
                pl.BlockSpec((kdim, khid), lambda i: (0, 0)),
                pl.BlockSpec((1, khid), lambda i: (0, 0)),
                pl.BlockSpec((f, hid_all), lambda i: (0, 0)),
                pl.BlockSpec((khid, hid_all), lambda i: (0, 0)),
                pl.BlockSpec((1, hid_all), lambda i: (0, 0)),
                pl.BlockSpec((hid_all, out_pad), lambda i: (0, 0)),
                pl.BlockSpec((1, out_pad), lambda i: (0, 0)),
            ],
            out_specs=pl.BlockSpec((1, 1, out_pad), lambda i: (i, 0, 0)),
        ),
        compiler_params=pltpu.CompilerParams(
            dimension_semantics=("parallel",),
            vmem_limit_bytes=int(vmem_limit)),
        cost_estimate=cost,
    )(patches, kde3,
      params["conv_w"], params["conv_b"], params["fc_w"], params["fc_b"],
      params["kde_w"], params["kde_b"],
      params["w1_base"], params["w1_kde"], params["b1"],
      params["w2"], params["b2"])

    return out.reshape(b, out_pad)[:, :OUT_DIM]        # drop lane padding


# ----------------------------------------------------------------------------
# Parameters / synthetic KDE table
# ----------------------------------------------------------------------------
def init_params(key):
    ks = jax.random.split(key, 7)
    conv_w = (jax.random.normal(ks[0], (9 * IN_CHANS, CONV_CH), jnp.float32)
              * 0.05).astype(jnp.bfloat16)
    conv_b = jnp.zeros((1, CONV_CH), jnp.float32)
    fc_w = (jax.random.normal(ks[1], (CONV_CH, NUM_FEATURES), jnp.float32)
            * 0.05).astype(jnp.bfloat16)
    fc_b = jnp.zeros((1, NUM_FEATURES), jnp.float32)

    kde_w = (jax.random.normal(ks[2], (KDE_DIM, KDE_HID), jnp.float32)
             * 0.05).astype(jnp.bfloat16)
    kde_b = jnp.zeros((1, KDE_HID), jnp.float32)

    # Linear(F+256, 64) per head, packed column-wise and split along its input
    # (base rows / kde rows) so the kernel needs no concat.
    w1_base = (jax.random.normal(ks[3], (NUM_FEATURES, HID_ALL), jnp.float32)
               * 0.05).astype(jnp.bfloat16)
    w1_kde = (jax.random.normal(ks[4], (KDE_HID, HID_ALL), jnp.float32)
              * 0.05).astype(jnp.bfloat16)
    b1 = jnp.zeros((1, HID_ALL), jnp.float32)

    # Per-head Linear(64 -> 1) packed as a block-diagonal, lane-padded matrix.
    w2_heads = jax.random.normal(ks[5], (OUT_DIM, HEAD_HID), jnp.float32) * 0.05
    b2_heads = jax.random.normal(ks[6], (OUT_DIM,), jnp.float32) * 0.01
    w2 = jnp.zeros((HID_ALL, OUT_PAD), jnp.float32)
    for hd in range(OUT_DIM):
        w2 = w2.at[hd * HEAD_HID:(hd + 1) * HEAD_HID, hd].set(w2_heads[hd])
    w2 = w2.astype(jnp.bfloat16)
    b2 = jnp.zeros((1, OUT_PAD), jnp.float32).at[0, :OUT_DIM].set(b2_heads)

    return {"conv_w": conv_w, "conv_b": conv_b, "fc_w": fc_w, "fc_b": fc_b,
            "kde_w": kde_w, "kde_b": kde_b,
            "w1_base": w1_base, "w1_kde": w1_kde, "b1": b1,
            "w2": w2, "b2": b2}


def make_kde_table(key, stripped_grades):
    # Deterministic stand-in for np.load(kde_{custom_str}_{grade}_grade.npy).
    table = {}
    for i, g in enumerate(sorted(set(stripped_grades))):
        table[g] = jax.random.normal(jax.random.fold_in(key, i),
                                     (KDE_DIM,), jnp.float32)
    return table


def load_kde_values(table, grade):
    return table[grade.replace('등심', '')]


# ----------------------------------------------------------------------------
# Pure-JAX reference (numerical sanity check; runs the matmul chain in f32)
# ----------------------------------------------------------------------------
def reference_forward(x, kde_raw, params):
    b, cin, h, w = x.shape
    x_nhwc = jnp.transpose(x, (0, 2, 3, 1))
    xp = jnp.pad(x_nhwc, ((0, 0), (1, 1), (1, 1), (0, 0)))
    taps = [xp[:, dh:dh + h, dw:dw + w, :]
            for dh in range(3) for dw in range(3)]
    patches = jnp.concatenate(taps, axis=-1).reshape(b, h * w, 9 * cin)
    feat = jnp.maximum(
        jnp.einsum("bmk,kc->bmc", patches, params["conv_w"].astype(jnp.float32))
        + params["conv_b"], 0.0)
    pooled = feat.mean(axis=1)
    base = pooled @ params["fc_w"].astype(jnp.float32) + params["fc_b"]
    kde = jnp.maximum(kde_raw @ params["kde_w"].astype(jnp.float32)
                      + params["kde_b"], 0.0)
    hid = jnp.maximum(base @ params["w1_base"].astype(jnp.float32)
                      + kde @ params["w1_kde"].astype(jnp.float32)
                      + params["b1"], 0.0)
    out = hid @ params["w2"].astype(jnp.float32) + params["b2"]
    return out[:, :OUT_DIM]


if __name__ == "__main__":
    B = 2
    key = jax.random.PRNGKey(0)
    kx, kp, kk = jax.random.split(key, 3)

    x = jax.random.normal(kx, (B, IN_CHANS, H, W), jnp.float32)
    params = init_params(kp)

    grades = ["1++등심", "1등심"]
    kde_table = make_kde_table(kk, [g.replace('등심', '') for g in grades])
    kde_raw = jnp.stack([load_kde_values(kde_table, g) for g in grades])

    out = jax.jit(mlp_layer_forward)(x, kde_raw, params)
    jax.block_until_ready(out)
    assert out.shape == (B, OUT_DIM), out.shape

    ref = reference_forward(x, kde_raw, params)
    err = float(jnp.max(jnp.abs(out - ref)))
    assert err < 5e-2, f"max abs error vs reference: {err}"

    print("KERNEL_OK")
</pallas_src>

<mosaic_0001>
module attributes {stable_mosaic.version = 11 : i64} {
  func.func @fused_mlp_layer_kernel(%arg0: i32, %arg1: memref<1x256x36xbf16, #tpu.memory_space<vmem>>, %arg2: memref<1x1x128xf32, #tpu.memory_space<vmem>>, %arg3: memref<36x128xbf16, #tpu.memory_space<vmem>>, %arg4: memref<1x128xf32, #tpu.memory_space<vmem>>, %arg5: memref<128x128xbf16, #tpu.memory_space<vmem>>, %arg6: memref<1x128xf32, #tpu.memory_space<vmem>>, %arg7: memref<128x256xbf16, #tpu.memory_space<vmem>>, %arg8: memref<1x256xf32, #tpu.memory_space<vmem>>, %arg9: memref<128x256xbf16, #tpu.memory_space<vmem>>, %arg10: memref<256x256xbf16, #tpu.memory_space<vmem>>, %arg11: memref<1x256xf32, #tpu.memory_space<vmem>>, %arg12: memref<256x128xbf16, #tpu.memory_space<vmem>>, %arg13: memref<1x128xf32, #tpu.memory_space<vmem>>, %arg14: memref<1x1x128xf32, #tpu.memory_space<vmem>>) attributes {dimension_semantics = [#tpu.dimension_semantics<parallel>], iteration_bounds = array<i64: 2>, scalar_prefetch = 0 : i64, scratch_operands = 0 : i64, tpu.core_type = #tpu.core_type<tc>, window_params = [{transform_indices = @transform_0, window_bounds = array<i64: 1, 256, 36>}, {transform_indices = @transform_1, window_bounds = array<i64: 1, 1, 128>}, {pipeline_mode = #tpu.pipeline_mode<synchronous>, transform_indices = @transform_2, window_bounds = array<i64: 36, 128>}, {pipeline_mode = #tpu.pipeline_mode<synchronous>, transform_indices = @transform_3, window_bounds = array<i64: 1, 128>}, {pipeline_mode = #tpu.pipeline_mode<synchronous>, transform_indices = @transform_4, window_bounds = array<i64: 128, 128>}, {pipeline_mode = #tpu.pipeline_mode<synchronous>, transform_indices = @transform_5, window_bounds = array<i64: 1, 128>}, {pipeline_mode = #tpu.pipeline_mode<synchronous>, transform_indices = @transform_6, window_bounds = array<i64: 128, 256>}, {pipeline_mode = #tpu.pipeline_mode<synchronous>, transform_indices = @transform_7, window_bounds = array<i64: 1, 256>}, {pipeline_mode = #tpu.pipeline_mode<synchronous>, transform_indices = @transform_8, window_bounds = array<i64: 128, 256>}, {pipeline_mode = #tpu.pipeline_mode<synchronous>, transform_indices = @transform_9, window_bounds = array<i64: 256, 256>}, {pipeline_mode = #tpu.pipeline_mode<synchronous>, transform_indices = @transform_10, window_bounds = array<i64: 1, 256>}, {pipeline_mode = #tpu.pipeline_mode<synchronous>, transform_indices = @transform_11, window_bounds = array<i64: 256, 128>}, {pipeline_mode = #tpu.pipeline_mode<synchronous>, transform_indices = @transform_12, window_bounds = array<i64: 1, 128>}, {transform_indices = @transform_13, window_bounds = array<i64: 1, 1, 128>}]} {
    %c0 = arith.constant 0 : index
    %c0_0 = arith.constant 0 : index
    %c0_1 = arith.constant 0 : index
    %0 = vector.load %arg1[%c0, %c0_0, %c0_1] : memref<1x256x36xbf16, #tpu.memory_space<vmem>>, vector<1x256x36xbf16>
    %1 = vector.shape_cast %0 : vector<1x256x36xbf16> to vector<256x36xbf16>
    %c0_2 = arith.constant 0 : index
    %c0_3 = arith.constant 0 : index
    %2 = vector.load %arg3[%c0_2, %c0_3] : memref<36x128xbf16, #tpu.memory_space<vmem>>, vector<36x128xbf16>
    %cst = arith.constant dense<0.000000e+00> : vector<256x128xf32>
    %3 = tpu.matmul %1, %2, %cst {dimension_numbers = #tpu.dot_dimension_numbers<[1], [0], [0], [1], [0, 0, 1, 1], [], []>} : vector<256x36xbf16>, vector<36x128xbf16>, vector<256x128xf32> -> vector<256x128xf32>
    %c0_4 = arith.constant 0 : index
    %c0_5 = arith.constant 0 : index
    %4 = vector.load %arg4[%c0_4, %c0_5] : memref<1x128xf32, #tpu.memory_space<vmem>>, vector<1x128xf32>
    %5 = vector.broadcast %4 : vector<1x128xf32> to vector<256x128xf32>
    %6 = arith.addf %3, %5 : vector<256x128xf32>
    %cst_6 = arith.constant 0.000000e+00 : f32
    %7 = vector.broadcast %cst_6 : f32 to vector<256x128xf32>
    %8 = arith.maximumf %6, %7 : vector<256x128xf32>
    %cst_7 = arith.constant dense<0.000000e+00> : vector<128xf32>
    %9 = vector.multi_reduction <add>, %8, %cst_7 [0] : vector<256x128xf32> to vector<128xf32>
    %10 = vector.shape_cast %9 : vector<128xf32> to vector<1x128xf32>
    %cst_8 = arith.constant 3.906250e-03 : f32
    %11 = vector.broadcast %cst_8 : f32 to vector<1x128xf32>
    %12 = arith.mulf %10, %11 : vector<1x128xf32>
    %13 = arith.truncf %12 : vector<1x128xf32> to vector<1x128xbf16>
    %c0_9 = arith.constant 0 : index
    %c0_10 = arith.constant 0 : index
    %14 = vector.load %arg5[%c0_9, %c0_10] : memref<128x128xbf16, #tpu.memory_space<vmem>>, vector<128x128xbf16>
    %cst_11 = arith.constant dense<0.000000e+00> : vector<1x128xf32>
    %15 = tpu.matmul %13, %14, %cst_11 {dimension_numbers = #tpu.dot_dimension_numbers<[1], [0], [0], [1], [0, 0, 1, 1], [], []>} : vector<1x128xbf16>, vector<128x128xbf16>, vector<1x128xf32> -> vector<1x128xf32>
    %c0_12 = arith.constant 0 : index
    %c0_13 = arith.constant 0 : index
    %16 = vector.load %arg6[%c0_12, %c0_13] : memref<1x128xf32, #tpu.memory_space<vmem>>, vector<1x128xf32>
    %17 = arith.addf %15, %16 : vector<1x128xf32>
    %c0_14 = arith.constant 0 : index
    %c0_15 = arith.constant 0 : index
    %c0_16 = arith.constant 0 : index
    %18 = vector.load %arg2[%c0_14, %c0_15, %c0_16] : memref<1x1x128xf32, #tpu.memory_space<vmem>>, vector<1x1x128xf32>
    %19 = vector.shape_cast %18 : vector<1x1x128xf32> to vector<1x128xf32>
    %20 = arith.truncf %19 : vector<1x128xf32> to vector<1x128xbf16>
    %c0_17 = arith.constant 0 : index
    %c0_18 = arith.constant 0 : index
    %21 = vector.load %arg7[%c0_17, %c0_18] : memref<128x256xbf16, #tpu.memory_space<vmem>>, vector<128x256xbf16>
    %cst_19 = arith.constant dense<0.000000e+00> : vector<1x256xf32>
    %22 = tpu.matmul %20, %21, %cst_19 {dimension_numbers = #tpu.dot_dimension_numbers<[1], [0], [0], [1], [0, 0, 1, 1], [], []>} : vector<1x128xbf16>, vector<128x256xbf16>, vector<1x256xf32> -> vector<1x256xf32>
    %c0_20 = arith.constant 0 : index
    %c0_21 = arith.constant 0 : index
    %23 = vector.load %arg8[%c0_20, %c0_21] : memref<1x256xf32, #tpu.memory_space<vmem>>, vector<1x256xf32>
    %24 = arith.addf %22, %23 : vector<1x256xf32>
    %cst_22 = arith.constant 0.000000e+00 : f32
    %25 = vector.broadcast %cst_22 : f32 to vector<1x256xf32>
    %26 = arith.maximumf %24, %25 : vector<1x256xf32>
    %27 = arith.truncf %17 : vector<1x128xf32> to vector<1x128xbf16>
    %c0_23 = arith.constant 0 : index
    %c0_24 = arith.constant 0 : index
    %28 = vector.load %arg9[%c0_23, %c0_24] : memref<128x256xbf16, #tpu.memory_space<vmem>>, vector<128x256xbf16>
    %cst_25 = arith.constant dense<0.000000e+00> : vector<1x256xf32>
    %29 = tpu.matmul %27, %28, %cst_25 {dimension_numbers = #tpu.dot_dimension_numbers<[1], [0], [0], [1], [0, 0, 1, 1], [], []>} : vector<1x128xbf16>, vector<128x256xbf16>, vector<1x256xf32> -> vector<1x256xf32>
    %30 = arith.truncf %26 : vector<1x256xf32> to vector<1x256xbf16>
    %c0_26 = arith.constant 0 : index
    %c0_27 = arith.constant 0 : index
    %31 = vector.load %arg10[%c0_26, %c0_27] : memref<256x256xbf16, #tpu.memory_space<vmem>>, vector<256x256xbf16>
    %cst_28 = arith.constant dense<0.000000e+00> : vector<1x256xf32>
    %32 = tpu.matmul %30, %31, %cst_28 {dimension_numbers = #tpu.dot_dimension_numbers<[1], [0], [0], [1], [0, 0, 1, 1], [], []>} : vector<1x256xbf16>, vector<256x256xbf16>, vector<1x256xf32> -> vector<1x256xf32>
    %33 = arith.addf %29, %32 : vector<1x256xf32>
    %c0_29 = arith.constant 0 : index
    %c0_30 = arith.constant 0 : index
    %34 = vector.load %arg11[%c0_29, %c0_30] : memref<1x256xf32, #tpu.memory_space<vmem>>, vector<1x256xf32>
    %35 = arith.addf %33, %34 : vector<1x256xf32>
    %cst_31 = arith.constant 0.000000e+00 : f32
    %36 = vector.broadcast %cst_31 : f32 to vector<1x256xf32>
    %37 = arith.maximumf %35, %36 : vector<1x256xf32>
    %38 = arith.truncf %37 : vector<1x256xf32> to vector<1x256xbf16>
    %c0_32 = arith.constant 0 : index
    %c0_33 = arith.constant 0 : index
    %39 = vector.load %arg12[%c0_32, %c0_33] : memref<256x128xbf16, #tpu.memory_space<vmem>>, vector<256x128xbf16>
    %cst_34 = arith.constant dense<0.000000e+00> : vector<1x128xf32>
    %40 = tpu.matmul %38, %39, %cst_34 {dimension_numbers = #tpu.dot_dimension_numbers<[1], [0], [0], [1], [0, 0, 1, 1], [], []>} : vector<1x256xbf16>, vector<256x128xbf16>, vector<1x128xf32> -> vector<1x128xf32>
    %c0_35 = arith.constant 0 : index
    %c0_36 = arith.constant 0 : index
    %41 = vector.load %arg13[%c0_35, %c0_36] : memref<1x128xf32, #tpu.memory_space<vmem>>, vector<1x128xf32>
    %42 = arith.addf %40, %41 : vector<1x128xf32>
    %c0_37 = arith.constant 0 : index
    %c0_38 = arith.constant 0 : index
    %c0_39 = arith.constant 0 : index
    %43 = vector.load %arg14[%c0_37, %c0_38, %c0_39] : memref<1x1x128xf32, #tpu.memory_space<vmem>>, vector<1x1x128xf32>
    %44 = vector.shape_cast %43 : vector<1x1x128xf32> to vector<1x128xf32>
    %45 = vector.shape_cast %42 : vector<1x128xf32> to vector<1x1x128xf32>
    tpu.vector_store %arg14[%c0_37, %c0_38, %c0_39], %45 {strides = array<i32>} : memref<1x1x128xf32, #tpu.memory_space<vmem>>, vector<1x1x128xf32>,
    return
  }
  func.func @transform_0(%arg0: i32) -> (i32, i32, i32) {
    %c0_i32 = arith.constant 0 : i32
    %c0_i32_0 = arith.constant 0 : i32
    %c0_i32_1 = arith.constant 0 : i32
    return %arg0, %c0_i32, %c0_i32_0 : i32, i32, i32
  }
  func.func @transform_1(%arg0: i32) -> (i32, i32, i32) {
    %c0_i32 = arith.constant 0 : i32
    %c0_i32_0 = arith.constant 0 : i32
    %c0_i32_1 = arith.constant 0 : i32
    return %arg0, %c0_i32, %c0_i32_0 : i32, i32, i32
  }
  func.func @transform_2(%arg0: i32) -> (i32, i32) {
    %c0_i32 = arith.constant 0 : i32
    %c0_i32_0 = arith.constant 0 : i32
    %c0_i32_1 = arith.constant 0 : i32
    return %c0_i32, %c0_i32_0 : i32, i32
  }
  func.func @transform_3(%arg0: i32) -> (i32, i32) {
    %c0_i32 = arith.constant 0 : i32
    %c0_i32_0 = arith.constant 0 : i32
    %c0_i32_1 = arith.constant 0 : i32
    return %c0_i32, %c0_i32_0 : i32, i32
  }
  func.func @transform_4(%arg0: i32) -> (i32, i32) {
    %c0_i32 = arith.constant 0 : i32
    %c0_i32_0 = arith.constant 0 : i32
    %c0_i32_1 = arith.constant 0 : i32
    return %c0_i32, %c0_i32_0 : i32, i32
  }
  func.func @transform_5(%arg0: i32) -> (i32, i32) {
    %c0_i32 = arith.constant 0 : i32
    %c0_i32_0 = arith.constant 0 : i32
    %c0_i32_1 = arith.constant 0 : i32
    return %c0_i32, %c0_i32_0 : i32, i32
  }
  func.func @transform_6(%arg0: i32) -> (i32, i32) {
    %c0_i32 = arith.constant 0 : i32
    %c0_i32_0 = arith.constant 0 : i32
    %c0_i32_1 = arith.constant 0 : i32
    return %c0_i32, %c0_i32_0 : i32, i32
  }
  func.func @transform_7(%arg0: i32) -> (i32, i32) {
    %c0_i32 = arith.constant 0 : i32
    %c0_i32_0 = arith.constant 0 : i32
    %c0_i32_1 = arith.constant 0 : i32
    return %c0_i32, %c0_i32_0 : i32, i32
  }
  func.func @transform_8(%arg0: i32) -> (i32, i32) {
    %c0_i32 = arith.constant 0 : i32
    %c0_i32_0 = arith.constant 0 : i32
    %c0_i32_1 = arith.constant 0 : i32
    return %c0_i32, %c0_i32_0 : i32, i32
  }
  func.func @transform_9(%arg0: i32) -> (i32, i32) {
    %c0_i32 = arith.constant 0 : i32
    %c0_i32_0 = arith.constant 0 : i32
    %c0_i32_1 = arith.constant 0 : i32
    return %c0_i32, %c0_i32_0 : i32, i32
  }
  func.func @transform_10(%arg0: i32) -> (i32, i32) {
    %c0_i32 = arith.constant 0 : i32
    %c0_i32_0 = arith.constant 0 : i32
    %c0_i32_1 = arith.constant 0 : i32
    return %c0_i32, %c0_i32_0 : i32, i32
  }
  func.func @transform_11(%arg0: i32) -> (i32, i32) {
    %c0_i32 = arith.constant 0 : i32
    %c0_i32_0 = arith.constant 0 : i32
    %c0_i32_1 = arith.constant 0 : i32
    return %c0_i32, %c0_i32_0 : i32, i32
  }
  func.func @transform_12(%arg0: i32) -> (i32, i32) {
    %c0_i32 = arith.constant 0 : i32
    %c0_i32_0 = arith.constant 0 : i32
    %c0_i32_1 = arith.constant 0 : i32
    return %c0_i32, %c0_i32_0 : i32, i32
  }
  func.func @transform_13(%arg0: i32) -> (i32, i32, i32) {
    %c0_i32 = arith.constant 0 : i32
    %c0_i32_0 = arith.constant 0 : i32
    %c0_i32_1 = arith.constant 0 : i32
    return %arg0, %c0_i32, %c0_i32_0 : i32, i32, i32
  }
}

</mosaic_0001>

<llo_original>
// kernel: mlp_layer_forward.1
$region0: #{mlp_layer_forward.1}
  #allocation0 [shape = 'u32[]', space=smem, size = 0x4, offset = 0x4, fixed_abs, tag = 'smem constant byte address 0x4 - core index']
  #allocation1 [shape = 'u32[72,128]{1,0:T(1,128)}', space=vmem, size = 0x9000, scoped, tag = 'internal scratch']
  %s0 = inlined_call_operand.vmem [shape: bf16[2,256,36], index: 0, kind: input, shape index: {}]
  %s1 = inlined_call_operand.vmem [shape: f32[2,1,128], index: 1, kind: input, shape index: {}]
  %s2 = inlined_call_operand.vmem [shape: bf16[36,128], index: 2, kind: input, shape index: {}]
  %s3 = inlined_call_operand.vmem [shape: f32[1,128], index: 3, kind: input, shape index: {}]
  %s4 = inlined_call_operand.vmem [shape: bf16[128,128], index: 4, kind: input, shape index: {}]
  %s5 = inlined_call_operand.vmem [shape: f32[1,128], index: 5, kind: input, shape index: {}]
  %s6 = inlined_call_operand.vmem [shape: bf16[128,256], index: 6, kind: input, shape index: {}]
  %s7 = inlined_call_operand.vmem [shape: f32[1,256], index: 7, kind: input, shape index: {}]
  %s8 = inlined_call_operand.vmem [shape: bf16[128,256], index: 8, kind: input, shape index: {}]
  %s9 = inlined_call_operand.vmem [shape: bf16[256,256], index: 9, kind: input, shape index: {}]
  %s10 = inlined_call_operand.vmem [shape: f32[1,256], index: 10, kind: input, shape index: {}]
  %s11 = inlined_call_operand.vmem [shape: bf16[256,128], index: 11, kind: input, shape index: {}]
  %s12 = inlined_call_operand.vmem [shape: f32[1,128], index: 12, kind: input, shape index: {}]
  %s13 = inlined_call_operand.hbm [shape: f32[2,1,128], index: 13, kind: output, shape index: {}]
  %s14 = sld [smem:[#allocation0]]
  $region85: #{mlp_layer_forward.1} parent=0
    _
  %s16 = ssub.s32 1, %s14
  %s17 = scalar_select 0, %s16, %s14
  $region1: #{mlp_layer_forward.1} parent=0
    #allocation2 [shape = 'u8[1024]{0}', space=vmem, size = 0x400, scoped, tag = 'output window, operand 0']
    #allocation3 [shape = 's32[2]{0}', space=sflag, size = 0x8, scoped, tag = 'scoped memory for mlp_layer_forward.1']
    %18 = vsyncpa [#allocation3], 0
    %s19 = scalar_lea.sflag [#allocation3], 1
    %20 = vsyncpa %s19, 0
    loop: start=0, step=1, limit=4
    $region2: #{mlp_layer_forward.1} parent=1 // loop_pre_header
      _
    $region3: #{mlp_layer_forward.1} parent=1 // loop_header
      %s22 = sphi 0, %s26
      %p23 = scmp.ge.s32.totalorder %s22, 4
      %s32 = sphi 0, %s34
      %s35 = sphi 0, %s32
      %s36 = sphi 0, %s35
      %s52 = sphi 0, %s36
      %s58 = sphi 0, %s60
      %s61 = sphi 0, %s58
      %s62 = sphi 0, %s61
      %s78 = sphi 0, %s62
      %s82 = sphi 0, %s82
      %s84 = sphi 0, %s82
      %s85 = sphi 0, %s84
      %s99 = sphi 0, %s85
      %s103 = sphi 0, %s103
      %s105 = sphi 0, %s103
      %s106 = sphi 0, %s105
      %s120 = sphi 0, %s106
      %s124 = sphi 0, %s124
      %s126 = sphi 0, %s124
      %s127 = sphi 0, %s126
      %s141 = sphi 0, %s127
      %s145 = sphi 0, %s145
      %s147 = sphi 0, %s145
      %s148 = sphi 0, %s147
      %s162 = sphi 0, %s148
      %s166 = sphi 0, %s166
      %s168 = sphi 0, %s166
      %s169 = sphi 0, %s168
      %s183 = sphi 0, %s169
      %s187 = sphi 0, %s187
      %s189 = sphi 0, %s187
      %s190 = sphi 0, %s189
      %s204 = sphi 0, %s190
      %s208 = sphi 0, %s208
      %s210 = sphi 0, %s208
      %s211 = sphi 0, %s210
      %s225 = sphi 0, %s211
      %s229 = sphi 0, %s229
      %s231 = sphi 0, %s229
      %s232 = sphi 0, %s231
      %s246 = sphi 0, %s232
      %s250 = sphi 0, %s250
      %s252 = sphi 0, %s250
      %s253 = sphi 0, %s252
      %s267 = sphi 0, %s253
      %s271 = sphi 0, %s271
      %s273 = sphi 0, %s271
      %s274 = sphi 0, %s273
      %s288 = sphi 0, %s274
      %s292 = sphi 0, %s292
      %s294 = sphi 0, %s292
      %s295 = sphi 0, %s294
      %s309 = sphi 0, %s295
      %s315 = sphi 0, %s317
      %s318 = sphi 0, %s315
      %s319 = sphi 0, %s318
      %s335 = sphi 0, %s319
    $region4: #{mlp_layer_forward.1} parent=1 // loop_header_branch
      %25 = sbr.rel (%p23) target = $region8
    $region5: #{mlp_layer_forward.1} parent=1 // loop_body
      %s27 = ssub.s32 %s22, 1
      %s28 = ssub.s32 %s22, 2
      %s29 = sadd.s32 %s22, 1
      %s30 = ssub.s32 %s22, %s29
      %p31 = scmp.eq.s32.totalorder %s30, 0
      %s33 = sadd.s32 %s32, 1
      %s34 = scalar_select %p31, %s32, %s33
      %p37 = pneg %p31
      %p38 = scmp.eq.s32.totalorder %s22, 1
      %p39 = por %p37, %p38
      %p40 = scmp.ne.s32.totalorder %s32, %s35
      %p41 = scmp.eq.s32.totalorder %s22, 0
      %p42 = por %p40, %p41
      %p43 = scmp.ne.s32.totalorder %s32, %s35
      %p44 = scmp.eq.s32.totalorder %s27, 1
      %p45 = por %p43, %p44
      %p46 = scmp.ne.s32.totalorder %s35, %s36
      %p47 = scmp.eq.s32.totalorder %s27, 0
      %p48 = por %p46, %p47
      %p49 = scmp.ne.s32.totalorder %s35, %s36
      %p50 = scmp.eq.s32.totalorder %s28, 1
      %p51 = por %p49, %p50
      %p53 = scmp.ne.s32.totalorder %s36, %s52
      %p54 = scmp.eq.s32.totalorder %s28, 0
      %p55 = por %p53, %p54
      %s56 = ssub.s32 %s22, %s29
      %p57 = scmp.eq.s32.totalorder %s56, 0
      %s59 = sadd.s32 %s58, 1
      %s60 = scalar_select %p57, %s58, %s59
      %p63 = pneg %p57
      %p64 = scmp.eq.s32.totalorder %s22, 1
      %p65 = por %p63, %p64
      %p66 = scmp.ne.s32.totalorder %s58, %s61
      %p67 = scmp.eq.s32.totalorder %s22, 0
      %p68 = por %p66, %p67
      %p69 = scmp.ne.s32.totalorder %s58, %s61
      %p70 = scmp.eq.s32.totalorder %s27, 1
      %p71 = por %p69, %p70
      %p72 = scmp.ne.s32.totalorder %s61, %s62
      %p73 = scmp.eq.s32.totalorder %s27, 0
      %p74 = por %p72, %p73
      %p75 = scmp.ne.s32.totalorder %s61, %s62
      %p76 = scmp.eq.s32.totalorder %s28, 1
      %p77 = por %p75, %p76
      %p79 = scmp.ne.s32.totalorder %s62, %s78
      %p80 = scmp.eq.s32.totalorder %s28, 0
      %p81 = por %p79, %p80
      %s83 = sadd.s32 %s82, 1
      %p86 = scmp.eq.s32.totalorder %s22, 1
      %p87 = scmp.ne.s32.totalorder %s82, %s84
      %p88 = scmp.eq.s32.totalorder %s22, 0
      %p89 = por %p87, %p88
      %p90 = scmp.ne.s32.totalorder %s82, %s84
      %p91 = scmp.eq.s32.totalorder %s27, 1
      %p92 = por %p90, %p91
      %p93 = scmp.ne.s32.totalorder %s84, %s85
      %p94 = scmp.eq.s32.totalorder %s27, 0
      %p95 = por %p93, %p94
      %p96 = scmp.ne.s32.totalorder %s84, %s85
      %p97 = scmp.eq.s32.totalorder %s28, 1
      %p98 = por %p96, %p97
      %p100 = scmp.ne.s32.totalorder %s85, %s99
      %p101 = scmp.eq.s32.totalorder %s28, 0
      %p102 = por %p100, %p101
      %s104 = sadd.s32 %s103, 1
      %p107 = scmp.eq.s32.totalorder %s22, 1
      %p108 = scmp.ne.s32.totalorder %s103, %s105
      %p109 = scmp.eq.s32.totalorder %s22, 0
      %p110 = por %p108, %p109
      %p111 = scmp.ne.s32.totalorder %s103, %s105
      %p112 = scmp.eq.s32.totalorder %s27, 1
      %p113 = por %p111, %p112
      %p114 = scmp.ne.s32.totalorder %s105, %s106
      %p115 = scmp.eq.s32.totalorder %s27, 0
      %p116 = por %p114, %p115
      %p117 = scmp.ne.s32.totalorder %s105, %s106
      %p118 = scmp.eq.s32.totalorder %s28, 1
      %p119 = por %p117, %p118
      %p121 = scmp.ne.s32.totalorder %s106, %s120
      %p122 = scmp.eq.s32.totalorder %s28, 0
      %p123 = por %p121, %p122
      %s125 = sadd.s32 %s124, 1
      %p128 = scmp.eq.s32.totalorder %s22, 1
      %p129 = scmp.ne.s32.totalorder %s124, %s126
      %p130 = scmp.eq.s32.totalorder %s22, 0
      %p131 = por %p129, %p130
      %p132 = scmp.ne.s32.totalorder %s124, %s126
      %p133 = scmp.eq.s32.totalorder %s27, 1
      %p134 = por %p132, %p133
      %p135 = scmp.ne.s32.totalorder %s126, %s127
      %p136 = scmp.eq.s32.totalorder %s27, 0
      %p137 = por %p135, %p136
      %p138 = scmp.ne.s32.totalorder %s126, %s127
      %p139 = scmp.eq.s32.totalorder %s28, 1
      %p140 = por %p138, %p139
      %p142 = scmp.ne.s32.totalorder %s127, %s141
      %p143 = scmp.eq.s32.totalorder %s28, 0
      %p144 = por %p142, %p143
      %s146 = sadd.s32 %s145, 1
      %p149 = scmp.eq.s32.totalorder %s22, 1
      %p150 = scmp.ne.s32.totalorder %s145, %s147
      %p151 = scmp.eq.s32.totalorder %s22, 0
      %p152 = por %p150, %p151
      %p153 = scmp.ne.s32.totalorder %s145, %s147
      %p154 = scmp.eq.s32.totalorder %s27, 1
      %p155 = por %p153, %p154
      %p156 = scmp.ne.s32.totalorder %s147, %s148
      %p157 = scmp.eq.s32.totalorder %s27, 0
      %p158 = por %p156, %p157
      %p159 = scmp.ne.s32.totalorder %s147, %s148
      %p160 = scmp.eq.s32.totalorder %s28, 1
      %p161 = por %p159, %p160
      %p163 = scmp.ne.s32.totalorder %s148, %s162
      %p164 = scmp.eq.s32.totalorder %s28, 0
      %p165 = por %p163, %p164
      %s167 = sadd.s32 %s166, 1
      %p170 = scmp.eq.s32.totalorder %s22, 1
      %p171 = scmp.ne.s32.totalorder %s166, %s168
      %p172 = scmp.eq.s32.totalorder %s22, 0
      %p173 = por %p171, %p172
      %p174 = scmp.ne.s32.totalorder %s166, %s168
      %p175 = scmp.eq.s32.totalorder %s27, 1
      %p176 = por %p174, %p175
      %p177 = scmp.ne.s32.totalorder %s168, %s169
      %p178 = scmp.eq.s32.totalorder %s27, 0
      %p179 = por %p177, %p178
      %p180 = scmp.ne.s32.totalorder %s168, %s169
      %p181 = scmp.eq.s32.totalorder %s28, 1
      %p182 = por %p180, %p181
      %p184 = scmp.ne.s32.totalorder %s169, %s183
      %p185 = scmp.eq.s32.totalorder %s28, 0
      %p186 = por %p184, %p185
      %s188 = sadd.s32 %s187, 1
      %p191 = scmp.eq.s32.totalorder %s22, 1
      %p192 = scmp.ne.s32.totalorder %s187, %s189
      %p193 = scmp.eq.s32.totalorder %s22, 0
      %p194 = por %p192, %p193
      %p195 = scmp.ne.s32.totalorder %s187, %s189
      %p196 = scmp.eq.s32.totalorder %s27, 1
      %p197 = por %p195, %p196
      %p198 = scmp.ne.s32.totalorder %s189, %s190
      %p199 = scmp.eq.s32.totalorder %s27, 0
      %p200 = por %p198, %p199
      %p201 = scmp.ne.s32.totalorder %s189, %s190
      %p202 = scmp.eq.s32.totalorder %s28, 1
      %p203 = por %p201, %p202
      %p205 = scmp.ne.s32.totalorder %s190, %s204
      %p206 = scmp.eq.s32.totalorder %s28, 0
      %p207 = por %p205, %p206
      %s209 = sadd.s32 %s208, 1
      %p212 = scmp.eq.s32.totalorder %s22, 1
      %p213 = scmp.ne.s32.totalorder %s208, %s210
      %p214 = scmp.eq.s32.totalorder %s22, 0
      %p215 = por %p213, %p214
      %p216 = scmp.ne.s32.totalorder %s208, %s210
      %p217 = scmp.eq.s32.totalorder %s27, 1
      %p218 = por %p216, %p217
      %p219 = scmp.ne.s32.totalorder %s210, %s211
      %p220 = scmp.eq.s32.totalorder %s27, 0
      %p221 = por %p219, %p220
      %p222 = scmp.ne.s32.totalorder %s210, %s211
      %p223 = scmp.eq.s32.totalorder %s28, 1
      %p224 = por %p222, %p223
      %p226 = scmp.ne.s32.totalorder %s211, %s225
      %p227 = scmp.eq.s32.totalorder %s28, 0
      %p228 = por %p226, %p227
      %s230 = sadd.s32 %s229, 1
      %p233 = scmp.eq.s32.totalorder %s22, 1
      %p234 = scmp.ne.s32.totalorder %s229, %s231
      %p235 = scmp.eq.s32.totalorder %s22, 0
      %p236 = por %p234, %p235
      %p237 = scmp.ne.s32.totalorder %s229, %s231
      %p238 = scmp.eq.s32.totalorder %s27, 1
      %p239 = por %p237, %p238
      %p240 = scmp.ne.s32.totalorder %s231, %s232
      %p241 = scmp.eq.s32.totalorder %s27, 0
      %p242 = por %p240, %p241
      %p243 = scmp.ne.s32.totalorder %s231, %s232
      %p244 = scmp.eq.s32.totalorder %s28, 1
      %p245 = por %p243, %p244
      %p247 = scmp.ne.s32.totalorder %s232, %s246
      %p248 = scmp.eq.s32.totalorder %s28, 0
      %p249 = por %p247, %p248
      %s251 = sadd.s32 %s250, 1
      %p254 = scmp.eq.s32.totalorder %s22, 1
      %p255 = scmp.ne.s32.totalorder %s250, %s252
      %p256 = scmp.eq.s32.totalorder %s22, 0
      %p257 = por %p255, %p256
      %p258 = scmp.ne.s32.totalorder %s250, %s252
      %p259 = scmp.eq.s32.totalorder %s27, 1
      %p260 = por %p258, %p259
      %p261 = scmp.ne.s32.totalorder %s252, %s253
      %p262 = scmp.eq.s32.totalorder %s27, 0
      %p263 = por %p261, %p262
      %p264 = scmp.ne.s32.totalorder %s252, %s253
      %p265 = scmp.eq.s32.totalorder %s28, 1
      %p266 = por %p264, %p265
      %p268 = scmp.ne.s32.totalorder %s253, %s267
      %p269 = scmp.eq.s32.totalorder %s28, 0
      %p270 = por %p268, %p269
      %s272 = sadd.s32 %s271, 1
      %p275 = scmp.eq.s32.totalorder %s22, 1
      %p276 = scmp.ne.s32.totalorder %s271, %s273
      %p277 = scmp.eq.s32.totalorder %s22, 0
      %p278 = por %p276, %p277
      %p279 = scmp.ne.s32.totalorder %s271, %s273
      %p280 = scmp.eq.s32.totalorder %s27, 1
      %p281 = por %p279, %p280
      %p282 = scmp.ne.s32.totalorder %s273, %s274
      %p283 = scmp.eq.s32.totalorder %s27, 0
      %p284 = por %p282, %p283
      %p285 = scmp.ne.s32.totalorder %s273, %s274
      %p286 = scmp.eq.s32.totalorder %s28, 1
      %p287 = por %p285, %p286
      %p289 = scmp.ne.s32.totalorder %s274, %s288
      %p290 = scmp.eq.s32.totalorder %s28, 0
      %p291 = por %p289, %p290
      %s293 = sadd.s32 %s292, 1
      %p296 = scmp.eq.s32.totalorder %s22, 1
      %p297 = scmp.ne.s32.totalorder %s292, %s294
      %p298 = scmp.eq.s32.totalorder %s22, 0
      %p299 = por %p297, %p298
      %p300 = scmp.ne.s32.totalorder %s292, %s294
      %p301 = scmp.eq.s32.totalorder %s27, 1
      %p302 = por %p300, %p301
      %p303 = scmp.ne.s32.totalorder %s294, %s295
      %p304 = scmp.eq.s32.totalorder %s27, 0
      %p305 = por %p303, %p304
      %p306 = scmp.ne.s32.totalorder %s294, %s295
      %p307 = scmp.eq.s32.totalorder %s28, 1
      %p308 = por %p306, %p307
      %p310 = scmp.ne.s32.totalorder %s295, %s309
      %p311 = scmp.eq.s32.totalorder %s28, 0
      %p312 = por %p310, %p311
      %s313 = ssub.s32 %s22, %s29
      %p314 = scmp.eq.s32.totalorder %s313, 0
      %s316 = sadd.s32 %s315, 1
      %s317 = scalar_select %p314, %s315, %s316
      %p320 = pneg %p314
      %p321 = scmp.eq.s32.totalorder %s22, 1
      %p322 = por %p320, %p321
      %p323 = scmp.ne.s32.totalorder %s315, %s318
      %p324 = scmp.eq.s32.totalorder %s22, 0
      %p325 = por %p323, %p324
      %p326 = scmp.ne.s32.totalorder %s315, %s318
      %p327 = scmp.eq.s32.totalorder %s27, 1
      %p328 = por %p326, %p327
      %p329 = scmp.ne.s32.totalorder %s318, %s319
      %p330 = scmp.eq.s32.totalorder %s27, 0
      %p331 = por %p329, %p330
      %p332 = scmp.ne.s32.totalorder %s318, %s319
      %p333 = scmp.eq.s32.totalorder %s28, 1
      %p334 = por %p332, %p333
      %p336 = scmp.ne.s32.totalorder %s319, %s335
      %p337 = scmp.eq.s32.totalorder %s28, 0
      %p338 = por %p336, %p337
      %p339 = scmp.le.s32.totalorder 1, %s22
      %p340 = scmp.lt.s32.totalorder %s22, 3
      %p341 = pnand %p339, %p340
      %p342 = pneg %p341
      // Predicated region
      $region9: #{mlp_layer_forward.1} parent=5 // pred_check
        _
      $region10: #{mlp_layer_forward.1} parent=5 // pred_check_branch
        %344 = sbr.rel (%p341) target = $region12
      $region11: #{mlp_layer_forward.1} parent=5 // pred_region
        %s345 = ssub.s32 %s22, 1
        // Predicated region
        $region13: #{mlp_layer_forward.1} parent=11 // pred_check
          %p346 = pneg %p95
        $region14: #{mlp_layer_forward.1} parent=11 // pred_check_branch
          %348 = sbr.rel (%p346) target = $region16
        $region15: #{mlp_layer_forward.1} parent=11 // pred_region
          _
        $region16: #{mlp_layer_forward.1} parent=11 // pred_fallthru
          _
        // Predicated region
        $region17: #{mlp_layer_forward.1} parent=11 // pred_check
          %p349 = pneg %p116
        $region18: #{mlp_layer_forward.1} parent=11 // pred_check_branch
          %351 = sbr.rel (%p349) target = $region20
        $region19: #{mlp_layer_forward.1} parent=11 // pred_region
          _
        $region20: #{mlp_layer_forward.1} parent=11 // pred_fallthru
          _
        // Predicated region
        $region21: #{mlp_layer_forward.1} parent=11 // pred_check
          %p352 = pneg %p137
        $region22: #{mlp_layer_forward.1} parent=11 // pred_check_branch
          %354 = sbr.rel (%p352) target = $region24
        $region23: #{mlp_layer_forward.1} parent=11 // pred_region
          _
        $region24: #{mlp_layer_forward.1} parent=11 // pred_fallthru
          _
        // Predicated region
        $region25: #{mlp_layer_forward.1} parent=11 // pred_check
          %p355 = pneg %p158
        $region26: #{mlp_layer_forward.1} parent=11 // pred_check_branch
          %357 = sbr.rel (%p355) target = $region28
        $region27: #{mlp_layer_forward.1} parent=11 // pred_region
          _
        $region28: #{mlp_layer_forward.1} parent=11 // pred_fallthru
          _
        // Predicated region
        $region29: #{mlp_layer_forward.1} parent=11 // pred_check
          %p358 = pneg %p179
        $region30: #{mlp_layer_forward.1} parent=11 // pred_check_branch
          %360 = sbr.rel (%p358) target = $region32
        $region31: #{mlp_layer_forward.1} parent=11 // pred_region
          _
        $region32: #{mlp_layer_forward.1} parent=11 // pred_fallthru
          _
        // Predicated region
        $region33: #{mlp_layer_forward.1} parent=11 // pred_check
          %p361 = pneg %p200
        $region34: #{mlp_layer_forward.1} parent=11 // pred_check_branch
          %363 = sbr.rel (%p361) target = $region36
        $region35: #{mlp_layer_forward.1} parent=11 // pred_region
          _
        $region36: #{mlp_layer_forward.1} parent=11 // pred_fallthru
          _
        // Predicated region
        $region37: #{mlp_layer_forward.1} parent=11 // pred_check
          %p364 = pneg %p221
        $region38: #{mlp_layer_forward.1} parent=11 // pred_check_branch
          %366 = sbr.rel (%p364) target = $region40
        $region39: #{mlp_layer_forward.1} parent=11 // pred_region
          _
        $region40: #{mlp_layer_forward.1} parent=11 // pred_fallthru
          _
        // Predicated region
        $region41: #{mlp_layer_forward.1} parent=11 // pred_check
          %p367 = pneg %p242
        $region42: #{mlp_layer_forward.1} parent=11 // pred_check_branch
          %369 = sbr.rel (%p367) target = $region44
        $region43: #{mlp_layer_forward.1} parent=11 // pred_region
          _
        $region44: #{mlp_layer_forward.1} parent=11 // pred_fallthru
          _
        // Predicated region
        $region45: #{mlp_layer_forward.1} parent=11 // pred_check
          %p370 = pneg %p263
        $region46: #{mlp_layer_forward.1} parent=11 // pred_check_branch
          %372 = sbr.rel (%p370) target = $region48
        $region47: #{mlp_layer_forward.1} parent=11 // pred_region
          _
        $region48: #{mlp_layer_forward.1} parent=11 // pred_fallthru
          _
        // Predicated region
        $region49: #{mlp_layer_forward.1} parent=11 // pred_check
          %p373 = pneg %p284
        $region50: #{mlp_layer_forward.1} parent=11 // pred_check_branch
          %375 = sbr.rel (%p373) target = $region52
        $region51: #{mlp_layer_forward.1} parent=11 // pred_region
          _
        $region52: #{mlp_layer_forward.1} parent=11 // pred_fallthru
          _
        // Predicated region
        $region53: #{mlp_layer_forward.1} parent=11 // pred_check
          %p376 = pneg %p305
        $region54: #{mlp_layer_forward.1} parent=11 // pred_check_branch
          %378 = sbr.rel (%p376) target = $region56
        $region55: #{mlp_layer_forward.1} parent=11 // pred_region
          _
        $region56: #{mlp_layer_forward.1} parent=11 // pred_fallthru
          _
      $region12: #{mlp_layer_forward.1} parent=5 // pred_fallthru
        _
      %p379 = scmp.lt.s32.totalorder %s22, 2
      // Predicated region
      $region57: #{mlp_layer_forward.1} parent=5 // pred_check
        %p380 = pneg %p379
      $region58: #{mlp_layer_forward.1} parent=5 // pred_check_branch
        %382 = sbr.rel (%p380) target = $region60
      $region59: #{mlp_layer_forward.1} parent=5 // pred_region
        // Predicated region
        $region61: #{mlp_layer_forward.1} parent=59 // pred_check
          %p383 = pneg %p42
        $region62: #{mlp_layer_forward.1} parent=59 // pred_check_branch
          %385 = sbr.rel (%p383) target = $region64
        $region63: #{mlp_layer_forward.1} parent=59 // pred_region
          %p386 = scmp.lt.s32.totalorder %s22, 1
          %s387 = scalar_select %p386, %s22, 1
          %s388 = smul.addr %s387, 32
          %s389 = smul.addr %s388, 4
          %s390 = scalar_lea.vmem %s0, %s389
        $region64: #{mlp_layer_forward.1} parent=59 // pred_fallthru
          _
        // Predicated region
        $region65: #{mlp_layer_forward.1} parent=59 // pred_check
          %p391 = pneg %p68
        $region66: #{mlp_layer_forward.1} parent=59 // pred_check_branch
          %393 = sbr.rel (%p391) target = $region68
        $region67: #{mlp_layer_forward.1} parent=59 // pred_region
          %p394 = scmp.lt.s32.totalorder %s22, 1
          %s395 = scalar_select %p394, %s22, 1
          %s396 = scalar_lea.vmem %s1, %s395
        $region68: #{mlp_layer_forward.1} parent=59 // pred_fallthru
          _
      $region60: #{mlp_layer_forward.1} parent=5 // pred_fallthru
        _
      %p397 = scmp.le.s32.totalorder 1, %s22
      %p398 = scmp.lt.s32.totalorder %s22, 3
      %p399 = pnand %p397, %p398
      %p400 = pneg %p399
      // Predicated region
      $region69: #{mlp_layer_forward.1} parent=5 // pred_check
        _
      $region70: #{mlp_layer_forward.1} parent=5 // pred_check_branch
        %402 = sbr.rel (%p399) target = $region72
      $region71: #{mlp_layer_forward.1} parent=5 // pred_region
        %s403 = ssub.s32 %s22, 1
        %p404 = scmp.lt.s32.totalorder %s27, 1
        %s405 = scalar_select %p404, %s27, 1
        %s406 = smul.addr %s405, 32
        %s407 = smul.addr %s406, 4
        %s408 = scalar_lea.vmem %s0, %s407
        %p409 = pneg %p48
        %p410 = pneg %p45
        %p411 = scmp.lt.s32.totalorder %s27, 1
        %s412 = scalar_select %p411, %s27, 1
        %s413 = scalar_lea.vmem %s1, %s412
        %p414 = pneg %p74
        %p415 = pneg %p71
        %p416 = pneg %p95
        %p417 = pneg %p92
        %p418 = pneg %p116
        %p419 = pneg %p113
        %p420 = pneg %p137
        %p421 = pneg %p134
        %p422 = pneg %p158
        %p423 = pneg %p155
        %p424 = pneg %p179
        %p425 = pneg %p176
        %p426 = pneg %p200
        %p427 = pneg %p197
        %p428 = pneg %p221
        %p429 = pneg %p218
        %p430 = pneg %p242
        %p431 = pneg %p239
        %p432 = pneg %p263
        %p433 = pneg %p260
        %p434 = pneg %p284
        %p435 = pneg %p281
        %p436 = pneg %p305
        %p437 = pneg %p302
        %p438 = pneg %p331
        %p439 = pneg %p328
        %s440 = sand.u32 %s318, 1
        %s441 = scalar_lea.sflag [#allocation3], %s440
        %s442 = sand.u32 %s318, 1
        %s443 = scalar_lea.vmem [#allocation2], %s442
        %p444 = scmp.lt.s32.totalorder %s27, 1
        %s445 = scalar_select %p444, %s27, 1
        %s446 = smul.addr %s445, 32
        %s447 = smul.addr %s446, 4
        %s448 = scalar_lea.vmem %s0, %s447
        %p449 = scmp.lt.s32.totalorder %s27, 1
        %s450 = scalar_select %p449, %s27, 1
        %s451 = scalar_lea.vmem %s1, %s450
        %v453 = vld [vmem:[%s448] sm:$0xf]
        %v454 = vld [vmem:[%s448 + $0x4] sm:$0xf]
        %v455 = vld [vmem:[%s448 + $0x8] sm:$0xf]
        %v456 = vld [vmem:[%s448 + $0xc] sm:$0xf]
        %v457 = vld [vmem:[%s448 + $0x10] sm:$0xf]
        %v458 = vld [vmem:[%s448 + $0x14] sm:$0xf]
        %v459 = vld [vmem:[%s448 + $0x18] sm:$0xf]
        %v460 = vld [vmem:[%s448 + $0x1c] sm:$0xf]
        %v461 = vld [vmem:[%s448 + $0x20] sm:$0xf]
        %v462 = vld [vmem:[%s448 + $0x24] sm:$0xf]
        %v463 = vld [vmem:[%s448 + $0x28] sm:$0xf]
        %v464 = vld [vmem:[%s448 + $0x2c] sm:$0xf]
        %v465 = vld [vmem:[%s448 + $0x30] sm:$0xf]
        %v466 = vld [vmem:[%s448 + $0x34] sm:$0xf]
        %v467 = vld [vmem:[%s448 + $0x38] sm:$0xf]
        %v468 = vld [vmem:[%s448 + $0x3c] sm:$0xf]
        %v469 = vld [vmem:[%s448 + $0x40] sm:$0xf]
        %v470 = vld [vmem:[%s448 + $0x44] sm:$0xf]
        %v471 = vld [vmem:[%s448 + $0x48] sm:$0xf]
        %v472 = vld [vmem:[%s448 + $0x4c] sm:$0xf]
        %v473 = vld [vmem:[%s448 + $0x50] sm:$0xf]
        %v474 = vld [vmem:[%s448 + $0x54] sm:$0xf]
        %v475 = vld [vmem:[%s448 + $0x58] sm:$0xf]
        %v476 = vld [vmem:[%s448 + $0x5c] sm:$0xf]
        %v477 = vld [vmem:[%s448 + $0x60] sm:$0xf]
        %v478 = vld [vmem:[%s448 + $0x64] sm:$0xf]
        %v479 = vld [vmem:[%s448 + $0x68] sm:$0xf]
        %v480 = vld [vmem:[%s448 + $0x6c] sm:$0xf]
        %v481 = vld [vmem:[%s448 + $0x70] sm:$0xf]
        %v482 = vld [vmem:[%s448 + $0x74] sm:$0xf]
        %v483 = vld [vmem:[%s448 + $0x78] sm:$0xf]
        %v484 = vld [vmem:[%s448 + $0x7c] sm:$0xf]
        %v485 = vld [vmem:[%s2] sm:$0xf]
        %v486 = vld [vmem:[%s2 + $0x4] sm:$0xf]
        %v487 = vld [vmem:[%s2 + $0x8] sm:$0xf]
        %v488 = vld [vmem:[%s2 + $0xc] sm:$0xf]
        %v489 = vld [vmem:[%s2 + $0x10] sm:$0x3]
        %v490 = vld [vmem:[%s3] sm:$0x1]
        %v492 = vperm.slane %v490, 0
        %v526 = vunpack.c.l.b16 %v453
        %v527 = vunpack.c.l.b16 %v454
        %v528 = vunpack.c.l.b16 %v455
        %v529 = vunpack.c.l.b16 %v456
        %v530 = vunpack.c.l.b16 %v457
        %v531 = vunpack.c.l.b16 %v458
        %v532 = vunpack.c.l.b16 %v459
        %v533 = vunpack.c.l.b16 %v460
        %v534 = vunpack.c.l.b16 %v461
        %v535 = vunpack.c.l.b16 %v462
        %v536 = vunpack.c.l.b16 %v463
        %v537 = vunpack.c.l.b16 %v464
        %v538 = vunpack.c.l.b16 %v465
        %v539 = vunpack.c.l.b16 %v466
        %v540 = vunpack.c.l.b16 %v467
        %v541 = vunpack.c.l.b16 %v468
        %v542 = vunpack.c.l.b16 %v469
        %v543 = vunpack.c.l.b16 %v470
        %v544 = vunpack.c.l.b16 %v471
        %v545 = vunpack.c.l.b16 %v472
        %v546 = vunpack.c.l.b16 %v473
        %v547 = vunpack.c.l.b16 %v474
        %v548 = vunpack.c.l.b16 %v475
        %v549 = vunpack.c.l.b16 %v476
        %v550 = vunpack.c.l.b16 %v477
        %v551 = vunpack.c.l.b16 %v478
        %v552 = vunpack.c.l.b16 %v479
        %v553 = vunpack.c.l.b16 %v480
        %v554 = vunpack.c.l.b16 %v481
        %v555 = vunpack.c.l.b16 %v482
        %v556 = vunpack.c.l.b16 %v483
        %v557 = vunpack.c.l.b16 %v484
        %v558 = vpack.c.b16 %v527, %v526
        %v559 = vpack.c.b16 %v529, %v528
        %v560 = vpack.c.b16 %v531, %v530
        %v561 = vpack.c.b16 %v533, %v532
        %v562 = vpack.c.b16 %v535, %v534
        %v563 = vpack.c.b16 %v537, %v536
        %v564 = vpack.c.b16 %v539, %v538
        %v565 = vpack.c.b16 %v541, %v540
        %v566 = vpack.c.b16 %v543, %v542
        %v567 = vpack.c.b16 %v545, %v544
        %v568 = vpack.c.b16 %v547, %v546
        %v569 = vpack.c.b16 %v549, %v548
        %v570 = vpack.c.b16 %v551, %v550
        %v571 = vpack.c.b16 %v553, %v552
        %v572 = vpack.c.b16 %v555, %v554
        %v573 = vpack.c.b16 %v557, %v556
        %v579 = vunpack.c.l.b16 %v485
        %v580 = vunpack.c.l.b16 %v486
        %v581 = vunpack.c.l.b16 %v487
        %v582 = vunpack.c.l.b16 %v488
        %v583 = vunpack.c.l.b16 %v489
        %v584 = vpack.c.b16 %v580, %v579
        %v585 = vpack.c.b16 %v582, %v581
        %v586 = vpack.c.b16 %v583, %v583
        %vm589 = vcmask 293888
        %v591 = vsel %vm589, %v558, 0
        %v594 = vsel %vm589, %v559, 0
        %v597 = vsel %vm589, %v560, 0
        %v600 = vsel %vm589, %v561, 0
        %v603 = vsel %vm589, %v562, 0
        %v606 = vsel %vm589, %v563, 0
        %v609 = vsel %vm589, %v564, 0
        %v612 = vsel %vm589, %v565, 0
        %v615 = vsel %vm589, %v566, 0
        %v618 = vsel %vm589, %v567, 0
        %v621 = vsel %vm589, %v568, 0
        %v624 = vsel %vm589, %v569, 0
        %v627 = vsel %vm589, %v570, 0
        %v630 = vsel %vm589, %v571, 0
        %v633 = vsel %vm589, %v572, 0
        %v636 = vsel %vm589, %v573, 0
        %vm638 = vcmask 1041408
        %v640 = vsel %vm638, %v586, 0
        %642 = vmatpush.bf16.msra.mxu0 0
        %643 = vmatpush.bf16.msra.mxu0 0
        %644 = vmatpush.bf16.msra.mxu0 0
        %645 = vmatpush.bf16.msra.mxu0 0
        %646 = vmatpush.bf16.msra.mxu0 0
        %647 = vmatpush.bf16.msra.mxu0 %v640
        %648 = vmatpush.bf16.msra.mxu0 %v585
        %649 = vmatpush.bf16.msra.mxu0 %v584
        %650 = vmatmul.bf16.gmra.mxu0 %v591
        %v651 = vpop.f32.mrf.mxu0
        %v652 = vadd.f32 %v492, %v651
        %v653 = vpop.f32.mrf.mxu0
        %v654 = vadd.f32 %v492, %v653
        %655 = vmatmul.bf16.gmra.mxu0 %v594
        %v656 = vpop.f32.mrf.mxu0
        %v657 = vadd.f32 %v492, %v656
        %v658 = vpop.f32.mrf.mxu0
        %v659 = vadd.f32 %v492, %v658
        %660 = vmatmul.bf16.gmra.mxu0 %v597
        %v661 = vpop.f32.mrf.mxu0
        %v662 = vadd.f32 %v492, %v661
        %v663 = vpop.f32.mrf.mxu0
        %v664 = vadd.f32 %v492, %v663
        %665 = vmatmul.bf16.gmra.mxu0 %v600
        %v666 = vpop.f32.mrf.mxu0
        %v667 = vadd.f32 %v492, %v666
        %v668 = vpop.f32.mrf.mxu0
        %v669 = vadd.f32 %v492, %v668
        %670 = vmatmul.bf16.gmra.mxu0 %v603
        %v671 = vpop.f32.mrf.mxu0
        %v672 = vadd.f32 %v492, %v671
        %v673 = vpop.f32.mrf.mxu0
        %v674 = vadd.f32 %v492, %v673
        %675 = vmatmul.bf16.gmra.mxu0 %v606
        %v676 = vpop.f32.mrf.mxu0
        %v677 = vadd.f32 %v492, %v676
        %v678 = vpop.f32.mrf.mxu0
        %v679 = vadd.f32 %v492, %v678
        %680 = vmatmul.bf16.gmra.mxu0 %v609
        %v681 = vpop.f32.mrf.mxu0
        %v682 = vadd.f32 %v492, %v681
        %v683 = vpop.f32.mrf.mxu0
        %v684 = vadd.f32 %v492, %v683
        %685 = vmatmul.bf16.gmra.mxu0 %v612
        %v686 = vpop.f32.mrf.mxu0
        %v687 = vadd.f32 %v492, %v686
        %v688 = vpop.f32.mrf.mxu0
        %v689 = vadd.f32 %v492, %v688
        %690 = vmatmul.bf16.gmra.mxu0 %v615
        %v691 = vpop.f32.mrf.mxu0
        %v692 = vadd.f32 %v492, %v691
        %v693 = vpop.f32.mrf.mxu0
        %v694 = vadd.f32 %v492, %v693
        %695 = vmatmul.bf16.gmra.mxu0 %v618
        %v696 = vpop.f32.mrf.mxu0
        %v697 = vadd.f32 %v492, %v696
        %v698 = vpop.f32.mrf.mxu0
        %v699 = vadd.f32 %v492, %v698
        %700 = vmatmul.bf16.gmra.mxu0 %v621
        %v701 = vpop.f32.mrf.mxu0
        %v702 = vadd.f32 %v492, %v701
        %v703 = vpop.f32.mrf.mxu0
        %v704 = vadd.f32 %v492, %v703
        %705 = vmatmul.bf16.gmra.mxu0 %v624
        %v706 = vpop.f32.mrf.mxu0
        %v707 = vadd.f32 %v492, %v706
        %v708 = vpop.f32.mrf.mxu0
        %v709 = vadd.f32 %v492, %v708
        %710 = vmatmul.bf16.gmra.mxu0 %v627
        %v711 = vpop.f32.mrf.mxu0
        %v712 = vadd.f32 %v492, %v711
        %v713 = vpop.f32.mrf.mxu0
        %v714 = vadd.f32 %v492, %v713
        %715 = vmatmul.bf16.gmra.mxu0 %v630
        %v716 = vpop.f32.mrf.mxu0
        %v717 = vadd.f32 %v492, %v716
        %v718 = vpop.f32.mrf.mxu0
        %v719 = vadd.f32 %v492, %v718
        %720 = vmatmul.bf16.gmra.mxu0 %v633
        %v721 = vpop.f32.mrf.mxu0
        %v722 = vadd.f32 %v492, %v721
        %v723 = vpop.f32.mrf.mxu0
        %v724 = vadd.f32 %v492, %v723
        %725 = vmatmul.bf16.gmra.mxu0 %v636
        %v726 = vpop.f32.mrf.mxu0
        %v727 = vadd.f32 %v492, %v726
        %v728 = vpop.f32.mrf.mxu0
        %v729 = vadd.f32 %v492, %v728
        %730 = vdwg.mxu0
        %v731 = vmax.f32 %v652, 0.0
        %v732 = vmax.f32 %v654, 0.0
        %v733 = vmax.f32 %v657, 0.0
        %v734 = vmax.f32 %v659, 0.0
        %v735 = vmax.f32 %v662, 0.0
        %v736 = vmax.f32 %v664, 0.0
        %v737 = vmax.f32 %v667, 0.0
        %v738 = vmax.f32 %v669, 0.0
        %v739 = vmax.f32 %v672, 0.0
        %v740 = vmax.f32 %v674, 0.0
        %v741 = vmax.f32 %v677, 0.0
        %v742 = vmax.f32 %v679, 0.0
        %v743 = vmax.f32 %v682, 0.0
        %v744 = vmax.f32 %v684, 0.0
        %v745 = vmax.f32 %v687, 0.0
        %v746 = vmax.f32 %v689, 0.0
        %v747 = vmax.f32 %v692, 0.0
        %v748 = vmax.f32 %v694, 0.0
        %v749 = vmax.f32 %v697, 0.0
        %v750 = vmax.f32 %v699, 0.0
        %v751 = vmax.f32 %v702, 0.0
        %v752 = vmax.f32 %v704, 0.0
        %v753 = vmax.f32 %v707, 0.0
        %v754 = vmax.f32 %v709, 0.0
        %v755 = vmax.f32 %v712, 0.0
        %v756 = vmax.f32 %v714, 0.0
        %v757 = vmax.f32 %v717, 0.0
        %v758 = vmax.f32 %v719, 0.0
        %v759 = vmax.f32 %v722, 0.0
        %v760 = vmax.f32 %v724, 0.0
        %v761 = vmax.f32 %v727, 0.0
        %v762 = vmax.f32 %v729, 0.0
        %v763 = vadd.f32 %v731, %v732
        %v764 = vadd.f32 %v763, %v733
        %v765 = vadd.f32 %v764, %v734
        %v766 = vadd.f32 %v765, %v735
        %v767 = vadd.f32 %v766, %v736
        %v768 = vadd.f32 %v767, %v737
        %v769 = vadd.f32 %v768, %v738
        %v770 = vadd.f32 %v769, %v739
        %v771 = vadd.f32 %v770, %v740
        %v772 = vadd.f32 %v771, %v741
        %v773 = vadd.f32 %v772, %v742
        %v774 = vadd.f32 %v773, %v743
        %v775 = vadd.f32 %v774, %v744
        %v776 = vadd.f32 %v775, %v745
        %v777 = vadd.f32 %v776, %v746
        %v778 = vadd.f32 %v777, %v747
        %v779 = vadd.f32 %v778, %v748
        %v780 = vadd.f32 %v779, %v749
        %v781 = vadd.f32 %v780, %v750
        %v782 = vadd.f32 %v781, %v751
        %v783 = vadd.f32 %v782, %v752
        %v784 = vadd.f32 %v783, %v753
        %v785 = vadd.f32 %v784, %v754
        %v786 = vadd.f32 %v785, %v755
        %v787 = vadd.f32 %v786, %v756
        %v788 = vadd.f32 %v787, %v757
        %v789 = vadd.f32 %v788, %v758
        %v790 = vadd.f32 %v789, %v759
        %v791 = vadd.f32 %v790, %v760
        %v792 = vadd.f32 %v791, %v761
        %v793 = vadd.f32 %v792, %v762
        %v794 = vrot.slane %v793, 4
        %v795 = vadd.f32 %v793, %v794
        %v796 = vrot.slane %v795, 2
        %v797 = vadd.f32 %v795, %v796
        %v798 = vrot.slane %v797, 1
        %v799 = vadd.f32 %v797, %v798
        %v800 = vmul.f32 %v799, 0.00390625
        %v801 = vpack.c.bf16 %v800, %v800
        %v802 = vld [vmem:[%s4] sm:$0xf]
        %v803 = vld [vmem:[%s4 + $0x4] sm:$0xf]
        %v804 = vld [vmem:[%s4 + $0x8] sm:$0xf]
        %v805 = vld [vmem:[%s4 + $0xc] sm:$0xf]
        %v806 = vld [vmem:[%s4 + $0x10] sm:$0xf]
        %v807 = vld [vmem:[%s4 + $0x14] sm:$0xf]
        %v808 = vld [vmem:[%s4 + $0x18] sm:$0xf]
        %v809 = vld [vmem:[%s4 + $0x1c] sm:$0xf]
        %v810 = vld [vmem:[%s4 + $0x20] sm:$0xf]
        %v811 = vld [vmem:[%s4 + $0x24] sm:$0xf]
        %v812 = vld [vmem:[%s4 + $0x28] sm:$0xf]
        %v813 = vld [vmem:[%s4 + $0x2c] sm:$0xf]
        %v814 = vld [vmem:[%s4 + $0x30] sm:$0xf]
        %v815 = vld [vmem:[%s4 + $0x34] sm:$0xf]
        %v816 = vld [vmem:[%s4 + $0x38] sm:$0xf]
        %v817 = vld [vmem:[%s4 + $0x3c] sm:$0xf]
        %v818 = vld [vmem:[%s5] sm:$0x1]
        %v835 = vunpack.c.l.b16 %v802
        %v836 = vunpack.c.l.b16 %v803
        %v837 = vunpack.c.l.b16 %v804
        %v838 = vunpack.c.l.b16 %v805
        %v839 = vunpack.c.l.b16 %v806
        %v840 = vunpack.c.l.b16 %v807
        %v841 = vunpack.c.l.b16 %v808
        %v842 = vunpack.c.l.b16 %v809
        %v843 = vunpack.c.l.b16 %v810
        %v844 = vunpack.c.l.b16 %v811
        %v845 = vunpack.c.l.b16 %v812
        %v846 = vunpack.c.l.b16 %v813
        %v847 = vunpack.c.l.b16 %v814
        %v848 = vunpack.c.l.b16 %v815
        %v849 = vunpack.c.l.b16 %v816
        %v850 = vunpack.c.l.b16 %v817
        %v851 = vpack.c.b16 %v836, %v835
        %v852 = vpack.c.b16 %v838, %v837
        %v853 = vpack.c.b16 %v840, %v839
        %v854 = vpack.c.b16 %v842, %v841
        %v855 = vpack.c.b16 %v844, %v843
        %v856 = vpack.c.b16 %v846, %v845
        %v857 = vpack.c.b16 %v848, %v847
        %v858 = vpack.c.b16 %v850, %v849
        %867 = vmatpush.bf16.msra.mxu0 %v858
        %868 = vmatpush.bf16.msra.mxu0 %v857
        %869 = vmatpush.bf16.msra.mxu0 %v856
        %870 = vmatpush.bf16.msra.mxu0 %v855
        %871 = vmatpush.bf16.msra.mxu0 %v854
        %872 = vmatpush.bf16.msra.mxu0 %v853
        %873 = vmatpush.bf16.msra.mxu0 %v852
        %874 = vmatpush.bf16.msra.mxu0 %v851
        %875 = vmatmul.bf16.gmra.mxu0 %v801
        %v876 = vpop.f32.mrf.mxu0
        %v877 = vadd.f32 %v818, %v876
        %v878 = vpop.f32.mrf.mxu0
        %879 = vdwg.mxu0
        %v880 = vld [vmem:[%s451] sm:$0x1]
        %v881 = vpack.c.bf16 %v880, %v880
        %v882 = vld [vmem:[%s6] sm:$0xff]
        %v883 = vld [vmem:[%s6 + $0x8] sm:$0xff]
        %v884 = vld [vmem:[%s6 + $0x10] sm:$0xff]
        %v885 = vld [vmem:[%s6 + $0x18] sm:$0xff]
        %v886 = vld [vmem:[%s6 + $0x20] sm:$0xff]
        %v887 = vld [vmem:[%s6 + $0x28] sm:$0xff]
        %v888 = vld [vmem:[%s6 + $0x30] sm:$0xff]
        %v889 = vld [vmem:[%s6 + $0x38] sm:$0xff]
        %v890 = vld [vmem:[%s6 + $0x40] sm:$0xff]
        %v891 = vld [vmem:[%s6 + $0x48] sm:$0xff]
        %v892 = vld [vmem:[%s6 + $0x50] sm:$0xff]
        %v893 = vld [vmem:[%s6 + $0x58] sm:$0xff]
        %v894 = vld [vmem:[%s6 + $0x60] sm:$0xff]
        %v895 = vld [vmem:[%s6 + $0x68] sm:$0xff]
        %v896 = vld [vmem:[%s6 + $0x70] sm:$0xff]
        %v897 = vld [vmem:[%s6 + $0x78] sm:$0xff]
        %v898 = vld [vmem:[%s7] sm:$0x3]
        %v915 = vunpack.c.l.b16 %v882
        %v916 = vunpack.c.h.b16 %v882
        %v917 = vunpack.c.l.b16 %v883
        %v918 = vunpack.c.h.b16 %v883
        %v919 = vunpack.c.l.b16 %v884
        %v920 = vunpack.c.h.b16 %v884
        %v921 = vunpack.c.l.b16 %v885
        %v922 = vunpack.c.h.b16 %v885
        %v923 = vunpack.c.l.b16 %v886
        %v924 = vunpack.c.h.b16 %v886
        %v925 = vunpack.c.l.b16 %v887
        %v926 = vunpack.c.h.b16 %v887
        %v927 = vunpack.c.l.b16 %v888
        %v928 = vunpack.c.h.b16 %v888
        %v929 = vunpack.c.l.b16 %v889
        %v930 = vunpack.c.h.b16 %v889
        %v931 = vunpack.c.l.b16 %v890
        %v932 = vunpack.c.h.b16 %v890
        %v933 = vunpack.c.l.b16 %v891
        %v934 = vunpack.c.h.b16 %v891
        %v935 = vunpack.c.l.b16 %v892
        %v936 = vunpack.c.h.b16 %v892
        %v937 = vunpack.c.l.b16 %v893
        %v938 = vunpack.c.h.b16 %v893
        %v939 = vunpack.c.l.b16 %v894
        %v940 = vunpack.c.h.b16 %v894
        %v941 = vunpack.c.l.b16 %v895
        %v942 = vunpack.c.h.b16 %v895
        %v943 = vunpack.c.l.b16 %v896
        %v944 = vunpack.c.h.b16 %v896
        %v945 = vunpack.c.l.b16 %v897
        %v946 = vunpack.c.h.b16 %v897
        %v947 = vpack.c.b16 %v917, %v915
        %v948 = vpack.c.b16 %v918, %v916
        %v949 = vpack.c.b16 %v921, %v919
        %v950 = vpack.c.b16 %v922, %v920
        %v951 = vpack.c.b16 %v925, %v923
        %v952 = vpack.c.b16 %v926, %v924
        %v953 = vpack.c.b16 %v929, %v927
        %v954 = vpack.c.b16 %v930, %v928
        %v955 = vpack.c.b16 %v933, %v931
        %v956 = vpack.c.b16 %v934, %v932
        %v957 = vpack.c.b16 %v937, %v935
        %v958 = vpack.c.b16 %v938, %v936
        %v959 = vpack.c.b16 %v941, %v939
        %v960 = vpack.c.b16 %v942, %v940
        %v961 = vpack.c.b16 %v945, %v943
        %v962 = vpack.c.b16 %v946, %v944
        %v980 = vperm.slane %v898, 0
        %v981 = vperm.slane %v898, 1
        %984 = vmatpush.bf16.msra.mxu0 %v961
        %985 = vmatpush.bf16.msra.mxu0 %v959
        %986 = vmatpush.bf16.msra.mxu0 %v957
        %987 = vmatpush.bf16.msra.mxu0 %v955
        %988 = vmatpush.bf16.msra.mxu0 %v953
        %989 = vmatpush.bf16.msra.mxu0 %v951
        %990 = vmatpush.bf16.msra.mxu0 %v949
        %991 = vmatpush.bf16.msra.mxu0 %v947
        %992 = vmatmul.bf16.gmra.mxu0 %v881
        %v993 = vpop.f32.mrf.mxu0
        %v994 = vadd.f32 %v980, %v993
        %v995 = vpop.f32.mrf.mxu0
        %996 = vdwg.mxu0
        %997 = vmatpush.bf16.msra.mxu0 %v962
        %998 = vmatpush.bf16.msra.mxu0 %v960
        %999 = vmatpush.bf16.msra.mxu0 %v958
        %1000 = vmatpush.bf16.msra.mxu0 %v956
        %1001 = vmatpush.bf16.msra.mxu0 %v954
        %1002 = vmatpush.bf16.msra.mxu0 %v952
        %1003 = vmatpush.bf16.msra.mxu0 %v950
        %1004 = vmatpush.bf16.msra.mxu0 %v948
        %1005 = vmatmul.bf16.gmra.mxu0 %v881
        %v1006 = vpop.f32.mrf.mxu0
        %v1007 = vadd.f32 %v981, %v1006
        %v1008 = vpop.f32.mrf.mxu0
        %1009 = vdwg.mxu0
        %v1010 = vmax.f32 %v994, 0.0
        %v1011 = vmax.f32 %v1007, 0.0
        %v1012 = vpack.c.bf16 %v877, %v877
        %v1013 = vld [vmem:[%s8] sm:$0xff]
        %v1014 = vld [vmem:[%s8 + $0x8] sm:$0xff]
        %v1015 = vld [vmem:[%s8 + $0x10] sm:$0xff]
        %v1016 = vld [vmem:[%s8 + $0x18] sm:$0xff]
        %v1017 = vld [vmem:[%s8 + $0x20] sm:$0xff]
        %v1018 = vld [vmem:[%s8 + $0x28] sm:$0xff]
        %v1019 = vld [vmem:[%s8 + $0x30] sm:$0xff]
        %v1020 = vld [vmem:[%s8 + $0x38] sm:$0xff]
        %v1021 = vld [vmem:[%s8 + $0x40] sm:$0xff]
        %v1022 = vld [vmem:[%s8 + $0x48] sm:$0xff]
        %v1023 = vld [vmem:[%s8 + $0x50] sm:$0xff]
        %v1024 = vld [vmem:[%s8 + $0x58] sm:$0xff]
        %v1025 = vld [vmem:[%s8 + $0x60] sm:$0xff]
        %v1026 = vld [vmem:[%s8 + $0x68] sm:$0xff]
        %v1027 = vld [vmem:[%s8 + $0x70] sm:$0xff]
        %v1028 = vld [vmem:[%s8 + $0x78] sm:$0xff]
        %v1029 = vpack.c.bf16 %v1010, %v1010
        %v1030 = vpack.c.bf16 %v1011, %v1011
        %v1031 = vld [vmem:[%s9] sm:$0xff]
        %v1032 = vld [vmem:[%s9 + $0x8] sm:$0xff]
        %v1033 = vld [vmem:[%s9 + $0x10] sm:$0xff]
        %v1034 = vld [vmem:[%s9 + $0x18] sm:$0xff]
        %v1035 = vld [vmem:[%s9 + $0x20] sm:$0xff]
        %v1036 = vld [vmem:[%s9 + $0x28] sm:$0xff]
        %v1037 = vld [vmem:[%s9 + $0x30] sm:$0xff]
        %v1038 = vld [vmem:[%s9 + $0x38] sm:$0xff]
        %v1039 = vld [vmem:[%s9 + $0x40] sm:$0xff]
        %v1040 = vld [vmem:[%s9 + $0x48] sm:$0xff]
        %v1041 = vld [vmem:[%s9 + $0x50] sm:$0xff]
        %v1042 = vld [vmem:[%s9 + $0x58] sm:$0xff]
        %v1043 = vld [vmem:[%s9 + $0x60] sm:$0xff]
        %v1044 = vld [vmem:[%s9 + $0x68] sm:$0xff]
        %v1045 = vld [vmem:[%s9 + $0x70] sm:$0xff]
        %v1046 = vld [vmem:[%s9 + $0x78] sm:$0xff]
        %v1047 = vld [vmem:[%s9 + $0x80] sm:$0xff]
        %v1048 = vld [vmem:[%s9 + $0x88] sm:$0xff]
        %v1049 = vld [vmem:[%s9 + $0x90] sm:$0xff]
        %v1050 = vld [vmem:[%s9 + $0x98] sm:$0xff]
        %v1051 = vld [vmem:[%s9 + $0xa0] sm:$0xff]
        %v1052 = vld [vmem:[%s9 + $0xa8] sm:$0xff]
        %v1053 = vld [vmem:[%s9 + $0xb0] sm:$0xff]
        %v1054 = vld [vmem:[%s9 + $0xb8] sm:$0xff]
        %v1055 = vld [vmem:[%s9 + $0xc0] sm:$0xff]
        %v1056 = vld [vmem:[%s9 + $0xc8] sm:$0xff]
        %v1057 = vld [vmem:[%s9 + $0xd0] sm:$0xff]
        %v1058 = vld [vmem:[%s9 + $0xd8] sm:$0xff]
        %v1059 = vld [vmem:[%s9 + $0xe0] sm:$0xff]
        %v1060 = vld [vmem:[%s9 + $0xe8] sm:$0xff]
        %v1061 = vld [vmem:[%s9 + $0xf0] sm:$0xff]
        %v1062 = vld [vmem:[%s9 + $0xf8] sm:$0xff]
        %v1095 = vunpack.c.l.b16 %v1031
        %v1096 = vunpack.c.h.b16 %v1031
        %v1097 = vunpack.c.l.b16 %v1032
        %v1098 = vunpack.c.h.b16 %v1032
        %v1099 = vunpack.c.l.b16 %v1033
        %v1100 = vunpack.c.h.b16 %v1033
        %v1101 = vunpack.c.l.b16 %v1034
        %v1102 = vunpack.c.h.b16 %v1034
        %v1103 = vunpack.c.l.b16 %v1035
        %v1104 = vunpack.c.h.b16 %v1035
        %v1105 = vunpack.c.l.b16 %v1036
        %v1106 = vunpack.c.h.b16 %v1036
        %v1107 = vunpack.c.l.b16 %v1037
        %v1108 = vunpack.c.h.b16 %v1037
        %v1109 = vunpack.c.l.b16 %v1038
        %v1110 = vunpack.c.h.b16 %v1038
        %v1111 = vunpack.c.l.b16 %v1039
        %v1112 = vunpack.c.h.b16 %v1039
        %v1113 = vunpack.c.l.b16 %v1040
        %v1114 = vunpack.c.h.b16 %v1040
        %v1115 = vunpack.c.l.b16 %v1041
        %v1116 = vunpack.c.h.b16 %v1041
        %v1117 = vunpack.c.l.b16 %v1042
        %v1118 = vunpack.c.h.b16 %v1042
        %v1119 = vunpack.c.l.b16 %v1043
        %v1120 = vunpack.c.h.b16 %v1043
        %v1121 = vunpack.c.l.b16 %v1044
        %v1122 = vunpack.c.h.b16 %v1044
        %v1123 = vunpack.c.l.b16 %v1045
        %v1124 = vunpack.c.h.b16 %v1045
        %v1125 = vunpack.c.l.b16 %v1046
        %v1126 = vunpack.c.h.b16 %v1046
        %v1127 = vunpack.c.l.b16 %v1047
        %v1128 = vunpack.c.h.b16 %v1047
        %v1129 = vunpack.c.l.b16 %v1048
        %v1130 = vunpack.c.h.b16 %v1048
        %v1131 = vunpack.c.l.b16 %v1049
        %v1132 = vunpack.c.h.b16 %v1049
        %v1133 = vunpack.c.l.b16 %v1050
        %v1134 = vunpack.c.h.b16 %v1050
        %v1135 = vunpack.c.l.b16 %v1051
        %v1136 = vunpack.c.h.b16 %v1051
        %v1137 = vunpack.c.l.b16 %v1052
        %v1138 = vunpack.c.h.b16 %v1052
        %v1139 = vunpack.c.l.b16 %v1053
        %v1140 = vunpack.c.h.b16 %v1053
        %v1141 = vunpack.c.l.b16 %v1054
        %v1142 = vunpack.c.h.b16 %v1054
        %v1143 = vunpack.c.l.b16 %v1055
        %v1144 = vunpack.c.h.b16 %v1055
        %v1145 = vunpack.c.l.b16 %v1056
        %v1146 = vunpack.c.h.b16 %v1056
        %v1147 = vunpack.c.l.b16 %v1057
        %v1148 = vunpack.c.h.b16 %v1057
        %v1149 = vunpack.c.l.b16 %v1058
        %v1150 = vunpack.c.h.b16 %v1058
        %v1151 = vunpack.c.l.b16 %v1059
        %v1152 = vunpack.c.h.b16 %v1059
        %v1153 = vunpack.c.l.b16 %v1060
        %v1154 = vunpack.c.h.b16 %v1060
        %v1155 = vunpack.c.l.b16 %v1061
        %v1156 = vunpack.c.h.b16 %v1061
        %v1157 = vunpack.c.l.b16 %v1062
        %v1158 = vunpack.c.h.b16 %v1062
        %v1159 = vpack.c.b16 %v1097, %v1095
        %v1160 = vpack.c.b16 %v1098, %v1096
        %v1161 = vpack.c.b16 %v1101, %v1099
        %v1162 = vpack.c.b16 %v1102, %v1100
        %v1163 = vpack.c.b16 %v1105, %v1103
        %v1164 = vpack.c.b16 %v1106, %v1104
        %v1165 = vpack.c.b16 %v1109, %v1107
        %v1166 = vpack.c.b16 %v1110, %v1108
        %v1167 = vpack.c.b16 %v1113, %v1111
        %v1168 = vpack.c.b16 %v1114, %v1112
        %v1169 = vpack.c.b16 %v1117, %v1115
        %v1170 = vpack.c.b16 %v1118, %v1116
        %v1171 = vpack.c.b16 %v1121, %v1119
        %v1172 = vpack.c.b16 %v1122, %v1120
        %v1173 = vpack.c.b16 %v1125, %v1123
        %v1174 = vpack.c.b16 %v1126, %v1124
        %v1175 = vpack.c.b16 %v1129, %v1127
        %v1176 = vpack.c.b16 %v1130, %v1128
        %v1177 = vpack.c.b16 %v1133, %v1131
        %v1178 = vpack.c.b16 %v1134, %v1132
        %v1179 = vpack.c.b16 %v1137, %v1135
        %v1180 = vpack.c.b16 %v1138, %v1136
        %v1181 = vpack.c.b16 %v1141, %v1139
        %v1182 = vpack.c.b16 %v1142, %v1140
        %v1183 = vpack.c.b16 %v1145, %v1143
        %v1184 = vpack.c.b16 %v1146, %v1144
        %v1185 = vpack.c.b16 %v1149, %v1147
        %v1186 = vpack.c.b16 %v1150, %v1148
        %v1187 = vpack.c.b16 %v1153, %v1151
        %v1188 = vpack.c.b16 %v1154, %v1152
        %v1189 = vpack.c.b16 %v1157, %v1155
        %v1190 = vpack.c.b16 %v1158, %v1156
        %1223 = vmatpush.bf16.msra.mxu0 %v1173
        %1224 = vmatpush.bf16.msra.mxu0 %v1171
        %1225 = vmatpush.bf16.msra.mxu0 %v1169
        %1226 = vmatpush.bf16.msra.mxu0 %v1167
        %1227 = vmatpush.bf16.msra.mxu0 %v1165
        %1228 = vmatpush.bf16.msra.mxu0 %v1163
        %1229 = vmatpush.bf16.msra.mxu0 %v1161
        %1230 = vmatpush.bf16.msra.mxu0 %v1159
        %1231 = vmatmul.bf16.gmra.mxu0 %v1029
        %v1232 = vpop.f32.mrf.mxu0
        %v1233 = vadd.f32 0.0, %v1232
        %v1234 = vpop.f32.mrf.mxu0
        %1235 = vdwg.mxu0
        %1236 = vmatpush.bf16.msra.mxu0 %v1189
        %1237 = vmatpush.bf16.msra.mxu0 %v1187
        %1238 = vmatpush.bf16.msra.mxu0 %v1185
        %1239 = vmatpush.bf16.msra.mxu0 %v1183
        %1240 = vmatpush.bf16.msra.mxu0 %v1181
        %1241 = vmatpush.bf16.msra.mxu0 %v1179
        %1242 = vmatpush.bf16.msra.mxu0 %v1177
        %1243 = vmatpush.bf16.msra.mxu0 %v1175
        %1244 = vmatmul.bf16.gmra.mxu0 %v1030
        %v1245 = vpop.f32.mrf.mxu0
        %v1246 = vadd.f32 %v1233, %v1245
        %v1247 = vpop.f32.mrf.mxu0
        %1248 = vdwg.mxu0
        %1249 = vmatpush.bf16.msra.mxu0 %v1174
        %1250 = vmatpush.bf16.msra.mxu0 %v1172
        %1251 = vmatpush.bf16.msra.mxu0 %v1170
        %1252 = vmatpush.bf16.msra.mxu0 %v1168
        %1253 = vmatpush.bf16.msra.mxu0 %v1166
        %1254 = vmatpush.bf16.msra.mxu0 %v1164
        %1255 = vmatpush.bf16.msra.mxu0 %v1162
        %1256 = vmatpush.bf16.msra.mxu0 %v1160
        %1257 = vmatmul.bf16.gmra.mxu0 %v1029
        %v1258 = vpop.f32.mrf.mxu0
        %v1259 = vadd.f32 0.0, %v1258
        %v1260 = vpop.f32.mrf.mxu0
        %1261 = vdwg.mxu0
        %1262 = vmatpush.bf16.msra.mxu0 %v1190
        %1263 = vmatpush.bf16.msra.mxu0 %v1188
        %1264 = vmatpush.bf16.msra.mxu0 %v1186
        %1265 = vmatpush.bf16.msra.mxu0 %v1184
        %1266 = vmatpush.bf16.msra.mxu0 %v1182
        %1267 = vmatpush.bf16.msra.mxu0 %v1180
        %1268 = vmatpush.bf16.msra.mxu0 %v1178
        %1269 = vmatpush.bf16.msra.mxu0 %v1176
        %1270 = vmatmul.bf16.gmra.mxu0 %v1030
        %v1271 = vpop.f32.mrf.mxu0
        %v1272 = vadd.f32 %v1259, %v1271
        %v1273 = vpop.f32.mrf.mxu0
        %1274 = vdwg.mxu0
        %v1291 = vunpack.c.l.b16 %v1013
        %v1292 = vunpack.c.h.b16 %v1013
        %v1293 = vunpack.c.l.b16 %v1014
        %v1294 = vunpack.c.h.b16 %v1014
        %v1295 = vunpack.c.l.b16 %v1015
        %v1296 = vunpack.c.h.b16 %v1015
        %v1297 = vunpack.c.l.b16 %v1016
        %v1298 = vunpack.c.h.b16 %v1016
        %v1299 = vunpack.c.l.b16 %v1017
        %v1300 = vunpack.c.h.b16 %v1017
        %v1301 = vunpack.c.l.b16 %v1018
        %v1302 = vunpack.c.h.b16 %v1018
        %v1303 = vunpack.c.l.b16 %v1019
        %v1304 = vunpack.c.h.b16 %v1019
        %v1305 = vunpack.c.l.b16 %v1020
        %v1306 = vunpack.c.h.b16 %v1020
        %v1307 = vunpack.c.l.b16 %v1021
        %v1308 = vunpack.c.h.b16 %v1021
        %v1309 = vunpack.c.l.b16 %v1022
        %v1310 = vunpack.c.h.b16 %v1022
        %v1311 = vunpack.c.l.b16 %v1023
        %v1312 = vunpack.c.h.b16 %v1023
        %v1313 = vunpack.c.l.b16 %v1024
        %v1314 = vunpack.c.h.b16 %v1024
        %v1315 = vunpack.c.l.b16 %v1025
        %v1316 = vunpack.c.h.b16 %v1025
        %v1317 = vunpack.c.l.b16 %v1026
        %v1318 = vunpack.c.h.b16 %v1026
        %v1319 = vunpack.c.l.b16 %v1027
        %v1320 = vunpack.c.h.b16 %v1027
        %v1321 = vunpack.c.l.b16 %v1028
        %v1322 = vunpack.c.h.b16 %v1028
        %v1323 = vpack.c.b16 %v1293, %v1291
        %v1324 = vpack.c.b16 %v1294, %v1292
        %v1325 = vpack.c.b16 %v1297, %v1295
        %v1326 = vpack.c.b16 %v1298, %v1296
        %v1327 = vpack.c.b16 %v1301, %v1299
        %v1328 = vpack.c.b16 %v1302, %v1300
        %v1329 = vpack.c.b16 %v1305, %v1303
        %v1330 = vpack.c.b16 %v1306, %v1304
        %v1331 = vpack.c.b16 %v1309, %v1307
        %v1332 = vpack.c.b16 %v1310, %v1308
        %v1333 = vpack.c.b16 %v1313, %v1311
        %v1334 = vpack.c.b16 %v1314, %v1312
        %v1335 = vpack.c.b16 %v1317, %v1315
        %v1336 = vpack.c.b16 %v1318, %v1316
        %v1337 = vpack.c.b16 %v1321, %v1319
        %v1338 = vpack.c.b16 %v1322, %v1320
        %1355 = vmatpush.bf16.msra.mxu0 %v1337
        %1356 = vmatpush.bf16.msra.mxu0 %v1335
        %1357 = vmatpush.bf16.msra.mxu0 %v1333
        %1358 = vmatpush.bf16.msra.mxu0 %v1331
        %1359 = vmatpush.bf16.msra.mxu0 %v1329
        %1360 = vmatpush.bf16.msra.mxu0 %v1327
        %1361 = vmatpush.bf16.msra.mxu0 %v1325
        %1362 = vmatpush.bf16.msra.mxu0 %v1323
        %1363 = vmatmul.bf16.gmra.mxu0 %v1012
        %v1364 = vpop.f32.mrf.mxu0
        %v1365 = vadd.f32 %v1246, %v1364
        %v1366 = vpop.f32.mrf.mxu0
        %1367 = vdwg.mxu0
        %1368 = vmatpush.bf16.msra.mxu0 %v1338
        %1369 = vmatpush.bf16.msra.mxu0 %v1336
        %1370 = vmatpush.bf16.msra.mxu0 %v1334
        %1371 = vmatpush.bf16.msra.mxu0 %v1332
        %1372 = vmatpush.bf16.msra.mxu0 %v1330
        %1373 = vmatpush.bf16.msra.mxu0 %v1328
        %1374 = vmatpush.bf16.msra.mxu0 %v1326
        %1375 = vmatpush.bf16.msra.mxu0 %v1324
        %1376 = vmatmul.bf16.gmra.mxu0 %v1012
        %v1377 = vpop.f32.mrf.mxu0
        %v1378 = vadd.f32 %v1272, %v1377
        %v1379 = vpop.f32.mrf.mxu0
        %1380 = vdwg.mxu0
        %v1381 = vld [vmem:[%s10] sm:$0x3]
        %v1383 = vperm.slane %v1381, 0
        %v1384 = vperm.slane %v1381, 1
        %v1387 = vadd.f32 %v1365, %v1383
        %v1388 = vadd.f32 %v1378, %v1384
        %v1389 = vmax.f32 %v1387, 0.0
        %v1390 = vmax.f32 %v1388, 0.0
        %v1391 = vpack.c.bf16 %v1389, %v1389
        %v1392 = vpack.c.bf16 %v1390, %v1390
        %v1393 = vld [vmem:[%s11] sm:$0xf]
        %v1394 = vld [vmem:[%s11 + $0x4] sm:$0xf]
        %v1395 = vld [vmem:[%s11 + $0x8] sm:$0xf]
        %v1396 = vld [vmem:[%s11 + $0xc] sm:$0xf]
        %v1397 = vld [vmem:[%s11 + $0x10] sm:$0xf]
        %v1398 = vld [vmem:[%s11 + $0x14] sm:$0xf]
        %v1399 = vld [vmem:[%s11 + $0x18] sm:$0xf]
        %v1400 = vld [vmem:[%s11 + $0x1c] sm:$0xf]
        %v1401 = vld [vmem:[%s11 + $0x20] sm:$0xf]
        %v1402 = vld [vmem:[%s11 + $0x24] sm:$0xf]
        %v1403 = vld [vmem:[%s11 + $0x28] sm:$0xf]
        %v1404 = vld [vmem:[%s11 + $0x2c] sm:$0xf]
        %v1405 = vld [vmem:[%s11 + $0x30] sm:$0xf]
        %v1406 = vld [vmem:[%s11 + $0x34] sm:$0xf]
        %v1407 = vld [vmem:[%s11 + $0x38] sm:$0xf]
        %v1408 = vld [vmem:[%s11 + $0x3c] sm:$0xf]
        %v1409 = vld [vmem:[%s11 + $0x40] sm:$0xf]
        %v1410 = vld [vmem:[%s11 + $0x44] sm:$0xf]
        %v1411 = vld [vmem:[%s11 + $0x48] sm:$0xf]
        %v1412 = vld [vmem:[%s11 + $0x4c] sm:$0xf]
        %v1413 = vld [vmem:[%s11 + $0x50] sm:$0xf]
        %v1414 = vld [vmem:[%s11 + $0x54] sm:$0xf]
        %v1415 = vld [vmem:[%s11 + $0x58] sm:$0xf]
        %v1416 = vld [vmem:[%s11 + $0x5c] sm:$0xf]
        %v1417 = vld [vmem:[%s11 + $0x60] sm:$0xf]
        %v1418 = vld [vmem:[%s11 + $0x64] sm:$0xf]
        %v1419 = vld [vmem:[%s11 + $0x68] sm:$0xf]
        %v1420 = vld [vmem:[%s11 + $0x6c] sm:$0xf]
        %v1421 = vld [vmem:[%s11 + $0x70] sm:$0xf]
        %v1422 = vld [vmem:[%s11 + $0x74] sm:$0xf]
        %v1423 = vld [vmem:[%s11 + $0x78] sm:$0xf]
        %v1424 = vld [vmem:[%s11 + $0x7c] sm:$0xf]
        %v1425 = vld [vmem:[%s12] sm:$0x1]
        %v1458 = vunpack.c.l.b16 %v1393
        %v1459 = vunpack.c.l.b16 %v1394
        %v1460 = vunpack.c.l.b16 %v1395
        %v1461 = vunpack.c.l.b16 %v1396
        %v1462 = vunpack.c.l.b16 %v1397
        %v1463 = vunpack.c.l.b16 %v1398
        %v1464 = vunpack.c.l.b16 %v1399
        %v1465 = vunpack.c.l.b16 %v1400
        %v1466 = vunpack.c.l.b16 %v1401
        %v1467 = vunpack.c.l.b16 %v1402
        %v1468 = vunpack.c.l.b16 %v1403
        %v1469 = vunpack.c.l.b16 %v1404
        %v1470 = vunpack.c.l.b16 %v1405
        %v1471 = vunpack.c.l.b16 %v1406
        %v1472 = vunpack.c.l.b16 %v1407
        %v1473 = vunpack.c.l.b16 %v1408
        %v1474 = vunpack.c.l.b16 %v1409
        %v1475 = vunpack.c.l.b16 %v1410
        %v1476 = vunpack.c.l.b16 %v1411
        %v1477 = vunpack.c.l.b16 %v1412
        %v1478 = vunpack.c.l.b16 %v1413
        %v1479 = vunpack.c.l.b16 %v1414
        %v1480 = vunpack.c.l.b16 %v1415
        %v1481 = vunpack.c.l.b16 %v1416
        %v1482 = vunpack.c.l.b16 %v1417
        %v1483 = vunpack.c.l.b16 %v1418
        %v1484 = vunpack.c.l.b16 %v1419
        %v1485 = vunpack.c.l.b16 %v1420
        %v1486 = vunpack.c.l.b16 %v1421
        %v1487 = vunpack.c.l.b16 %v1422
        %v1488 = vunpack.c.l.b16 %v1423
        %v1489 = vunpack.c.l.b16 %v1424
        %v1490 = vpack.c.b16 %v1459, %v1458
        %v1491 = vpack.c.b16 %v1461, %v1460
        %v1492 = vpack.c.b16 %v1463, %v1462
        %v1493 = vpack.c.b16 %v1465, %v1464
        %v1494 = vpack.c.b16 %v1467, %v1466
        %v1495 = vpack.c.b16 %v1469, %v1468
        %v1496 = vpack.c.b16 %v1471, %v1470
        %v1497 = vpack.c.b16 %v1473, %v1472
        %v1498 = vpack.c.b16 %v1475, %v1474
        %v1499 = vpack.c.b16 %v1477, %v1476
        %v1500 = vpack.c.b16 %v1479, %v1478
        %v1501 = vpack.c.b16 %v1481, %v1480
        %v1502 = vpack.c.b16 %v1483, %v1482
        %v1503 = vpack.c.b16 %v1485, %v1484
        %v1504 = vpack.c.b16 %v1487, %v1486
        %v1505 = vpack.c.b16 %v1489, %v1488
        %1522 = vmatpush.bf16.msra.mxu0 %v1497
        %1523 = vmatpush.bf16.msra.mxu0 %v1496
        %1524 = vmatpush.bf16.msra.mxu0 %v1495
        %1525 = vmatpush.bf16.msra.mxu0 %v1494
        %1526 = vmatpush.bf16.msra.mxu0 %v1493
        %1527 = vmatpush.bf16.msra.mxu0 %v1492
        %1528 = vmatpush.bf16.msra.mxu0 %v1491
        %1529 = vmatpush.bf16.msra.mxu0 %v1490
        %1530 = vmatmul.bf16.gmra.mxu0 %v1391
        %v1531 = vpop.f32.mrf.mxu0
        %v1532 = vadd.f32 %v1425, %v1531
        %v1533 = vpop.f32.mrf.mxu0
        %1534 = vdwg.mxu0
        %1535 = vmatpush.bf16.msra.mxu0 %v1505
        %1536 = vmatpush.bf16.msra.mxu0 %v1504
        %1537 = vmatpush.bf16.msra.mxu0 %v1503
        %1538 = vmatpush.bf16.msra.mxu0 %v1502
        %1539 = vmatpush.bf16.msra.mxu0 %v1501
        %1540 = vmatpush.bf16.msra.mxu0 %v1500
        %1541 = vmatpush.bf16.msra.mxu0 %v1499
        %1542 = vmatpush.bf16.msra.mxu0 %v1498
        %1543 = vmatmul.bf16.gmra.mxu0 %v1392
        %v1544 = vpop.f32.mrf.mxu0
        %v1545 = vadd.f32 %v1532, %v1544
        %v1546 = vpop.f32.mrf.mxu0
        %1547 = vdwg.mxu0
        %1548 = vst [vmem:[%s443] sm:$0x1] %v1545
        %s1549 = sand.u32 %s318, 1
        %s1550 = scalar_lea.sflag [#allocation3], %s1549
        %s1551 = sand.u32 %s318, 1
        %s1552 = scalar_lea.vmem [#allocation2], %s1551
        // Predicated region
        $region73: #{mlp_layer_forward.1} parent=71 // pred_check
          %p1553 = pneg %p328
        $region74: #{mlp_layer_forward.1} parent=71 // pred_check_branch
          %1555 = sbr.rel (%p1553) target = $region76
        $region75: #{mlp_layer_forward.1} parent=71 // pred_region
          %1557 = vsyncadd %s1550, 0
          %s1558 = scalar_lea.hbm %s13, %s27
          %s1560 = sshll.u32 %s1552, 4
          %s1561 = int_to_ptr.vmem [resolvable:$true] %s1560
          %s1562 = sshll.u32 %s1558, 4
          %s1563 = int_to_ptr.hbm [resolvable:$true] %s1562
          %1565 = dma.vmem_to_hbm [thread:$0]  %s1561, 16, %s1563, %s1550
        $region76: #{mlp_layer_forward.1} parent=71 // pred_fallthru
          _
      $region72: #{mlp_layer_forward.1} parent=5 // pred_fallthru
        _
      %p1566 = scmp.le.s32.totalorder 2, %s22
      // Predicated region
      $region77: #{mlp_layer_forward.1} parent=5 // pred_check
        %p1567 = pneg %p1566
      $region78: #{mlp_layer_forward.1} parent=5 // pred_check_branch
        %1569 = sbr.rel (%p1567) target = $region80
      $region79: #{mlp_layer_forward.1} parent=5 // pred_region
        %s1570 = ssub.s32 %s22, 2
        // Predicated region
        $region81: #{mlp_layer_forward.1} parent=79 // pred_check
          %p1571 = pneg %p334
        $region82: #{mlp_layer_forward.1} parent=79 // pred_check_branch
          %1573 = sbr.rel (%p1571) target = $region84
        $region83: #{mlp_layer_forward.1} parent=79 // pred_region
          %s1574 = sand.u32 %s319, 1
          %s1575 = scalar_lea.sflag [#allocation3], %s1574
          %s1576 = sand.u32 %s319, 1
          %s1577 = scalar_lea.vmem [#allocation2], %s1576
          %1579 = dma.done %s1575, 16
        $region84: #{mlp_layer_forward.1} parent=79 // pred_fallthru
          _
      $region80: #{mlp_layer_forward.1} parent=5 // pred_fallthru
        _
    $region6: #{mlp_layer_forward.1} parent=1 // loop_footer
      %s26 = sadd.s32 1, %s22
    $region7: #{mlp_layer_forward.1} parent=1 // loop_footer_branch
      %21 = sbr.rel target = $region3
    $region8: #{mlp_layer_forward.1} parent=1 // loop_exit
      _
    %1580 = vsyncpa [#allocation3], 1
    %s1581 = scalar_lea.sflag [#allocation3], 1
    %1582 = vsyncpa %s1581, 1

</llo_original>
